<compile_context>
chip_gen: v7x
topology: tpu7x:2x2x1
jax: 0.10.0
libtpu: 0.0.40
codegen_flags: <defaults>
</compile_context>

<pallas_src>
import functools

import jax
import jax.numpy as jnp
import numpy as np
from jax.experimental import pallas as pl
from jax.experimental.pallas import tpu as pltpu


# ---------------------------------------------------------------------------
# In-kernel color helpers (elementwise / EUP ops on (rows, HW) planes)
# ---------------------------------------------------------------------------
def _rgb_to_hsv(r, g, b, eps=1e-8):
    maxc = jnp.maximum(jnp.maximum(r, g), b)
    minc = jnp.minimum(jnp.minimum(r, g), b)
    delta = maxc - minc
    inv_max = pl.reciprocal(maxc + eps, approx=True)
    inv_delta = pl.reciprocal(delta + eps, approx=True)
    s = delta * inv_max
    rc = (maxc - r) * inv_delta
    gc = (maxc - g) * inv_delta
    bc = (maxc - b) * inv_delta
    h = jnp.where(maxc == r, bc - gc,
                  jnp.where(maxc == g, 2.0 + rc - bc, 4.0 + gc - rc))
    h = h * (1.0 / 6.0)
    h = h - jnp.floor(h)  # mod 1.0
    return h, s, maxc


def _hsv_to_rgb(h, s, v):
    h6 = h * 6.0
    i = jnp.floor(h6)
    f = h6 - i
    p = v * (1.0 - s)
    q = v * (1.0 - f * s)
    t = v * (1.0 - (1.0 - f) * s)
    im = i - 6.0 * jnp.floor(i * (1.0 / 6.0))  # i mod 6
    r = jnp.where(im == 0, v, jnp.where(im == 1, q, jnp.where(
        im == 2, p, jnp.where(im == 3, p, jnp.where(im == 4, t, v)))))
    g = jnp.where(im == 0, t, jnp.where(im == 1, v, jnp.where(
        im == 2, v, jnp.where(im == 3, q, jnp.where(im == 4, p, p)))))
    b = jnp.where(im == 0, p, jnp.where(im == 1, p, jnp.where(
        im == 2, t, jnp.where(im == 3, v, jnp.where(im == 4, v, q)))))
    return r, g, b


def _color_jiggle(r, g, b, br, ct, sat, hue):
    """r, g, b: (rows, HW) in [0,1]; br/ct/sat/hue: (rows, 1) per-image params."""
    # TODO(synk): Kornia's ColorJiggle randomizes the order of the 4 ops per
    # call; a fixed brightness->contrast->saturation->hue order is used here.
    # TODO(synk): hue is added as a fraction of a full turn (torchvision
    # convention); Kornia's scaled-hue-channel convention may differ slightly.
    r = jnp.clip(r * br, 0.0, 1.0)
    g = jnp.clip(g * br, 0.0, 1.0)
    b = jnp.clip(b * br, 0.0, 1.0)
    # contrast (blend with the per-image scalar mean of the grayscale image)
    gray = 0.299 * r + 0.587 * g + 0.114 * b
    mean = jnp.mean(gray, axis=1, keepdims=True)        # (rows, 1)
    r = jnp.clip(ct * r + (1.0 - ct) * mean, 0.0, 1.0)
    g = jnp.clip(ct * g + (1.0 - ct) * mean, 0.0, 1.0)
    b = jnp.clip(ct * b + (1.0 - ct) * mean, 0.0, 1.0)
    # saturation (blend with per-pixel grayscale)
    gray = 0.299 * r + 0.587 * g + 0.114 * b
    r = jnp.clip(sat * r + (1.0 - sat) * gray, 0.0, 1.0)
    g = jnp.clip(sat * g + (1.0 - sat) * gray, 0.0, 1.0)
    b = jnp.clip(sat * b + (1.0 - sat) * gray, 0.0, 1.0)
    # hue (HSV round trip)
    h, s, v = _rgb_to_hsv(r, g, b)
    h = h + hue
    h = h - jnp.floor(h)  # mod 1.0
    r, g, b = _hsv_to_rgb(h, s, v)
    return (jnp.clip(r, 0.0, 1.0),
            jnp.clip(g, 0.0, 1.0),
            jnp.clip(b, 0.0, 1.0))


# ---------------------------------------------------------------------------
# Pallas kernel: one grid step = tb samples of BOTH x and y, fully vectorized
# ---------------------------------------------------------------------------
def _aug_kernel(params_ref, pmat_ref, x_ref, y_ref, xo_ref, yo_ref, *, c, tb, hw):
    # params_ref: (tb, 8) VMEM block; pmat_ref: (2, hw, hw) constant table.
    # x_ref / y_ref / xo_ref / yo_ref: (tb, c*hw) lane-dense blocks.
    p = params_ref[...].astype(jnp.float32)               # (tb, 8)
    hflip, vflip, jig = p[:, 0:1], p[:, 1:2], p[:, 2:3]   # (tb, 1) each
    br, ct, sat, hue = p[:, 3:4], p[:, 4:5], p[:, 5:6], p[:, 6:7]

    x = x_ref[...].astype(jnp.float32)                    # (tb, c*hw)
    y = y_ref[...].astype(jnp.float32)

    # Channel-major slab over BOTH images: tb-row groups ordered
    # [x_r, y_r, x_g, y_g, x_b, y_b]; each row is one full (hw,) plane.
    planes = []
    for ch in range(c):
        planes.append(x[:, ch * hw:(ch + 1) * hw])
        planes.append(y[:, ch * hw:(ch + 1) * hw])
    slab = jnp.concatenate(planes, axis=0)                 # (2*c*tb, hw)

    # ---- flips: two full-slab matmuls against the (hw, hw) permutation
    #      matrices (shared RHS for all channels of x AND y), then a
    #      per-sample select.  Permutation matmul in f32 is exact.
    nrep = 2 * c
    hm = jnp.concatenate([hflip] * nrep, axis=0) > 0.5     # (2*c*tb, 1)
    vm = jnp.concatenate([vflip] * nrep, axis=0) > 0.5
    slab = jnp.where(
        hm, jnp.dot(slab, pmat_ref[0], preferred_element_type=jnp.float32), slab)
    slab = jnp.where(
        vm, jnp.dot(slab, pmat_ref[1], preferred_element_type=jnp.float32), slab)

    # ---- color jiggle on all 2*tb image copies, predicated with jnp.where
    two_tb = 2 * tb
    r0 = slab[0 * two_tb:1 * two_tb]                       # (2tb, hw): [x_r; y_r]
    g0 = slab[1 * two_tb:2 * two_tb]
    b0 = slab[2 * two_tb:3 * two_tb]
    br2 = jnp.concatenate([br, br], axis=0)                # (2tb, 1)
    ct2 = jnp.concatenate([ct, ct], axis=0)
    sat2 = jnp.concatenate([sat, sat], axis=0)
    hue2 = jnp.concatenate([hue, hue], axis=0)
    jm = jnp.concatenate([jig, jig], axis=0) > 0.5

    rj, gj, bj = _color_jiggle(r0, g0, b0, br2, ct2, sat2, hue2)
    r = jnp.where(jm, rj, r0)
    g = jnp.where(jm, gj, g0)
    b = jnp.where(jm, bj, b0)

    # ---- write back: lane slices at multiples of 128 -> dense unmasked stores
    xdt = xo_ref.dtype
    xo_ref[:, 0 * hw:1 * hw] = r[:tb].astype(xdt)
    xo_ref[:, 1 * hw:2 * hw] = g[:tb].astype(xdt)
    xo_ref[:, 2 * hw:3 * hw] = b[:tb].astype(xdt)
    ydt = yo_ref.dtype
    yo_ref[:, 0 * hw:1 * hw] = r[tb:].astype(ydt)
    yo_ref[:, 1 * hw:2 * hw] = g[tb:].astype(ydt)
    yo_ref[:, 2 * hw:3 * hw] = b[tb:].astype(ydt)


# ---------------------------------------------------------------------------
# Wrapper
# ---------------------------------------------------------------------------
def _make_flip_mats(h, w):
    """(2, HW, HW) f32: [0]=horizontal (reverse W), [1]=vertical (reverse H).
    Defined so that flat_plane @ P = flipped flat plane (P[src, dst] = 1)."""
    hw = h * w
    p = np.arange(hw)
    ph, pw = p // w, p % w
    src_h = ph * w + (w - 1 - pw)
    src_v = (h - 1 - ph) * w + pw
    mats = []
    for src in (src_h, src_v):
        m = np.zeros((hw, hw), np.float32)
        m[src, p] = 1.0
        mats.append(m)
    return jnp.asarray(np.stack(mats))


def _pick_tb(n, cap=64):
    """Pick samples-per-step: prefer a divisor of n that is a multiple of 8
    (dense sublane tiles), <= cap, and keeps >= 2 grid steps."""
    divs = [d for d in range(1, n + 1) if n % d == 0]
    for pred in (lambda d: d % 8 == 0 and d <= cap and n // d >= 2,
                 lambda d: d % 8 == 0 and d <= cap,
                 lambda d: d <= cap and n // d >= 2,
                 lambda d: True):
        cand = [d for d in divs if pred(d)]
        if cand:
            return max(cand)
    return n


def data_augmentation(x, y, params, *, block_size=None):
    """x, y: (N, C, H, W) float32 in [0,1]. params: (N, 8) float32."""
    n, c, h, w = x.shape
    assert c == 3, "ColorJiggle path assumes RGB images"
    hw = h * w
    chw = c * hw
    tb = _pick_tb(n) if block_size is None else block_size
    assert n % tb == 0

    # Lane-dense presentation: (N, C*H*W), last dim a multiple of 128.
    x2 = x.reshape(n, chw)
    y2 = y.reshape(n, chw)
    params = params.astype(jnp.float32)
    flip_mats = _make_flip_mats(h, w)      # (2, hw, hw) constant (index_map is
                                           # constant, so it is DMA'd only once)

    img_spec = pl.BlockSpec((tb, chw), lambda i: (i, 0))
    kernel = functools.partial(_aug_kernel, c=c, tb=tb, hw=hw)

    cost = pl.CostEstimate(
        flops=int(4 * 2 * c * n * hw * hw + 200 * n * c * hw),
        transcendentals=int(12 * n * hw),
        bytes_accessed=int(4 * n * chw * 4 + 2 * hw * hw * 4 + n * 8 * 4),
    )

    xo, yo = pl.pallas_call(
        kernel,
        out_shape=(
            jax.ShapeDtypeStruct((n, chw), x.dtype),
            jax.ShapeDtypeStruct((n, chw), y.dtype),
        ),
        grid=(n // tb,),
        in_specs=[
            pl.BlockSpec((tb, 8), lambda i: (i, 0)),          # per-sample params
            pl.BlockSpec((2, hw, hw), lambda i: (0, 0, 0)),   # flip permutations
            img_spec,                                         # x
            img_spec,                                         # y
        ],
        out_specs=[img_spec, img_spec],
        compiler_params=pltpu.CompilerParams(
            dimension_semantics=("parallel",)),
        cost_estimate=cost,
    )(params, flip_mats, x2, y2)

    return xo.reshape(n, c, h, w), yo.reshape(n, c, h, w)


# ---------------------------------------------------------------------------
# Deterministic per-sample augmentation parameters (plain JAX "glue")
# config = {'hor_flip': True, 'ver_flip': True, 'col_jig': True}
# ---------------------------------------------------------------------------
def make_aug_params(key, n, config):
    ks = jax.random.split(key, 7)
    hflip = jax.random.bernoulli(ks[0], 0.5, (n,)).astype(jnp.float32)
    vflip = jax.random.bernoulli(ks[1], 0.5, (n,)).astype(jnp.float32)
    jig = jax.random.bernoulli(ks[2], 0.5, (n,)).astype(jnp.float32)
    if not config['hor_flip']:
        hflip = jnp.zeros_like(hflip)
    if not config['ver_flip']:
        vflip = jnp.zeros_like(vflip)
    if not config['col_jig']:
        jig = jnp.zeros_like(jig)
    # ColorJiggle(0.1, 0.1, 0.25, 0.5)
    br = jax.random.uniform(ks[3], (n,), minval=0.9, maxval=1.1)
    ct = jax.random.uniform(ks[4], (n,), minval=0.9, maxval=1.1)
    sat = jax.random.uniform(ks[5], (n,), minval=0.75, maxval=1.25)
    hue = jax.random.uniform(ks[6], (n,), minval=-0.5, maxval=0.5)
    pad = jnp.zeros((n,), jnp.float32)
    return jnp.stack([hflip, vflip, jig, br, ct, sat, hue, pad], axis=1)


if __name__ == "__main__":
    config = {'hor_flip': True, 'ver_flip': True, 'col_jig': True}
    N, C, H, W = 16, 3, 16, 16    # tb=8 -> grid of 2 steps (both v7x TCs busy)

    key = jax.random.PRNGKey(0)
    kx, ky, kp = jax.random.split(key, 3)
    x = jax.random.uniform(kx, (N, C, H, W), dtype=jnp.float32)
    y = jax.random.uniform(ky, (N, C, H, W), dtype=jnp.float32)
    params = make_aug_params(kp, N, config)

    x_out, y_out = jax.jit(data_augmentation)(x, y, params)
    jax.block_until_ready((x_out, y_out))

    assert x_out.shape == x.shape and y_out.shape == y.shape
    assert x_out.dtype == x.dtype and y_out.dtype == y.dtype

    # Sanity check: flip-only samples must match the expected flip exactly;
    # jiggled samples must be finite and stay in [0, 1].
    x_np, y_np = np.asarray(x), np.asarray(y)
    xo_np, yo_np = np.asarray(x_out), np.asarray(y_out)
    p_np = np.asarray(params)
    for i in range(N):
        hf, vf, jg = p_np[i, 0] > 0.5, p_np[i, 1] > 0.5, p_np[i, 2] > 0.5
        for src, out in ((x_np, xo_np), (y_np, yo_np)):
            ref = src[i]
            if hf:
                ref = ref[:, :, ::-1]
            if vf:
                ref = ref[:, ::-1, :]
            if not jg:
                assert np.allclose(out[i], ref, atol=1e-6), f"flip mismatch {i}"
            else:
                assert np.all(np.isfinite(out[i]))
                assert out[i].min() >= -1e-6 and out[i].max() <= 1.0 + 1e-6

    print("KERNEL_OK")
</pallas_src>

<mosaic_0001>
module attributes {stable_mosaic.version = 11 : i64} {
  func.func @_aug_kernel(%arg0: i32, %arg1: memref<8x8xf32, #tpu.memory_space<vmem>>, %arg2: memref<2x256x256xf32, #tpu.memory_space<vmem>>, %arg3: memref<8x768xf32, #tpu.memory_space<vmem>>, %arg4: memref<8x768xf32, #tpu.memory_space<vmem>>, %arg5: memref<8x768xf32, #tpu.memory_space<vmem>>, %arg6: memref<8x768xf32, #tpu.memory_space<vmem>>) attributes {dimension_semantics = [#tpu.dimension_semantics<parallel>], iteration_bounds = array<i64: 2>, scalar_prefetch = 0 : i64, scratch_operands = 0 : i64, tpu.core_type = #tpu.core_type<tc>, window_params = [{transform_indices = @transform_0, window_bounds = array<i64: 8, 8>}, {pipeline_mode = #tpu.pipeline_mode<synchronous>, transform_indices = @transform_1, window_bounds = array<i64: 2, 256, 256>}, {transform_indices = @transform_2, window_bounds = array<i64: 8, 768>}, {transform_indices = @transform_3, window_bounds = array<i64: 8, 768>}, {transform_indices = @transform_4, window_bounds = array<i64: 8, 768>}, {transform_indices = @transform_5, window_bounds = array<i64: 8, 768>}]} {
    %c0 = arith.constant 0 : index
    %c0_0 = arith.constant 0 : index
    %0 = vector.load %arg1[%c0, %c0_0] : memref<8x8xf32, #tpu.memory_space<vmem>>, vector<8x8xf32>
    %1 = vector.extract_strided_slice %0 {offsets = [0, 0], sizes = [8, 1], strides = [1, 1]} : vector<8x8xf32> to vector<8x1xf32>
    %2 = vector.extract_strided_slice %0 {offsets = [0, 1], sizes = [8, 1], strides = [1, 1]} : vector<8x8xf32> to vector<8x1xf32>
    %3 = vector.extract_strided_slice %0 {offsets = [0, 2], sizes = [8, 1], strides = [1, 1]} : vector<8x8xf32> to vector<8x1xf32>
    %4 = vector.extract_strided_slice %0 {offsets = [0, 3], sizes = [8, 1], strides = [1, 1]} : vector<8x8xf32> to vector<8x1xf32>
    %5 = vector.extract_strided_slice %0 {offsets = [0, 4], sizes = [8, 1], strides = [1, 1]} : vector<8x8xf32> to vector<8x1xf32>
    %6 = vector.extract_strided_slice %0 {offsets = [0, 5], sizes = [8, 1], strides = [1, 1]} : vector<8x8xf32> to vector<8x1xf32>
    %7 = vector.extract_strided_slice %0 {offsets = [0, 6], sizes = [8, 1], strides = [1, 1]} : vector<8x8xf32> to vector<8x1xf32>
    %c0_1 = arith.constant 0 : index
    %c0_2 = arith.constant 0 : index
    %8 = vector.load %arg3[%c0_1, %c0_2] : memref<8x768xf32, #tpu.memory_space<vmem>>, vector<8x768xf32>
    %c0_3 = arith.constant 0 : index
    %c0_4 = arith.constant 0 : index
    %9 = vector.load %arg4[%c0_3, %c0_4] : memref<8x768xf32, #tpu.memory_space<vmem>>, vector<8x768xf32>
    %10 = vector.extract_strided_slice %8 {offsets = [0, 0], sizes = [8, 256], strides = [1, 1]} : vector<8x768xf32> to vector<8x256xf32>
    %11 = vector.extract_strided_slice %9 {offsets = [0, 0], sizes = [8, 256], strides = [1, 1]} : vector<8x768xf32> to vector<8x256xf32>
    %12 = vector.extract_strided_slice %8 {offsets = [0, 256], sizes = [8, 256], strides = [1, 1]} : vector<8x768xf32> to vector<8x256xf32>
    %13 = vector.extract_strided_slice %9 {offsets = [0, 256], sizes = [8, 256], strides = [1, 1]} : vector<8x768xf32> to vector<8x256xf32>
    %14 = vector.extract_strided_slice %8 {offsets = [0, 512], sizes = [8, 256], strides = [1, 1]} : vector<8x768xf32> to vector<8x256xf32>
    %15 = vector.extract_strided_slice %9 {offsets = [0, 512], sizes = [8, 256], strides = [1, 1]} : vector<8x768xf32> to vector<8x256xf32>
    %16 = tpu.concatenate %10, %11, %12, %13, %14, %15 in 0 : vector<8x256xf32>, vector<8x256xf32>, vector<8x256xf32>, vector<8x256xf32>, vector<8x256xf32>, vector<8x256xf32> -> vector<48x256xf32>
    %17 = tpu.concatenate %1, %1, %1, %1, %1, %1 in 0 : vector<8x1xf32>, vector<8x1xf32>, vector<8x1xf32>, vector<8x1xf32>, vector<8x1xf32>, vector<8x1xf32> -> vector<48x1xf32>
    %cst = arith.constant 5.000000e-01 : f32
    %18 = vector.broadcast %cst : f32 to vector<48x1xf32>
    %19 = arith.cmpf ogt, %17, %18 : vector<48x1xf32>
    %20 = tpu.concatenate %2, %2, %2, %2, %2, %2 in 0 : vector<8x1xf32>, vector<8x1xf32>, vector<8x1xf32>, vector<8x1xf32>, vector<8x1xf32>, vector<8x1xf32> -> vector<48x1xf32>
    %cst_5 = arith.constant 5.000000e-01 : f32
    %21 = vector.broadcast %cst_5 : f32 to vector<48x1xf32>
    %22 = arith.cmpf ogt, %20, %21 : vector<48x1xf32>
    %c0_6 = arith.constant 0 : index
    %c0_7 = arith.constant 0 : index
    %c0_8 = arith.constant 0 : index
    %23 = vector.load %arg2[%c0_6, %c0_7, %c0_8] : memref<2x256x256xf32, #tpu.memory_space<vmem>>, vector<1x256x256xf32>
    %24 = vector.shape_cast %23 : vector<1x256x256xf32> to vector<256x256xf32>
    %cst_9 = arith.constant dense<0.000000e+00> : vector<48x256xf32>
    %25 = tpu.matmul %16, %24, %cst_9 {dimension_numbers = #tpu.dot_dimension_numbers<[1], [0], [0], [1], [0, 0, 1, 1], [], []>} : vector<48x256xf32>, vector<256x256xf32>, vector<48x256xf32> -> vector<48x256xf32>
    %26 = vector.shape_cast %19 : vector<48x1xi1> to vector<48x1xi1>
    %27 = vector.broadcast %26 : vector<48x1xi1> to vector<48x256xi1>
    %28 = arith.select %27, %25, %16 : vector<48x256xi1>, vector<48x256xf32>
    %c1 = arith.constant 1 : index
    %c0_10 = arith.constant 0 : index
    %c0_11 = arith.constant 0 : index
    %29 = vector.load %arg2[%c1, %c0_10, %c0_11] : memref<2x256x256xf32, #tpu.memory_space<vmem>>, vector<1x256x256xf32>
    %30 = vector.shape_cast %29 : vector<1x256x256xf32> to vector<256x256xf32>
    %cst_12 = arith.constant dense<0.000000e+00> : vector<48x256xf32>
    %31 = tpu.matmul %28, %30, %cst_12 {dimension_numbers = #tpu.dot_dimension_numbers<[1], [0], [0], [1], [0, 0, 1, 1], [], []>} : vector<48x256xf32>, vector<256x256xf32>, vector<48x256xf32> -> vector<48x256xf32>
    %32 = vector.shape_cast %22 : vector<48x1xi1> to vector<48x1xi1>
    %33 = vector.broadcast %32 : vector<48x1xi1> to vector<48x256xi1>
    %34 = arith.select %33, %31, %28 : vector<48x256xi1>, vector<48x256xf32>
    %35 = vector.extract_strided_slice %34 {offsets = [0, 0], sizes = [16, 256], strides = [1, 1]} : vector<48x256xf32> to vector<16x256xf32>
    %36 = vector.extract_strided_slice %34 {offsets = [16, 0], sizes = [16, 256], strides = [1, 1]} : vector<48x256xf32> to vector<16x256xf32>
    %37 = vector.extract_strided_slice %34 {offsets = [32, 0], sizes = [16, 256], strides = [1, 1]} : vector<48x256xf32> to vector<16x256xf32>
    %38 = tpu.concatenate %4, %4 in 0 : vector<8x1xf32>, vector<8x1xf32> -> vector<16x1xf32>
    %39 = tpu.concatenate %5, %5 in 0 : vector<8x1xf32>, vector<8x1xf32> -> vector<16x1xf32>
    %40 = tpu.concatenate %6, %6 in 0 : vector<8x1xf32>, vector<8x1xf32> -> vector<16x1xf32>
    %41 = tpu.concatenate %7, %7 in 0 : vector<8x1xf32>, vector<8x1xf32> -> vector<16x1xf32>
    %42 = tpu.concatenate %3, %3 in 0 : vector<8x1xf32>, vector<8x1xf32> -> vector<16x1xf32>
    %cst_13 = arith.constant 5.000000e-01 : f32
    %43 = vector.broadcast %cst_13 : f32 to vector<16x1xf32>
    %44 = arith.cmpf ogt, %42, %43 : vector<16x1xf32>
    %45 = vector.broadcast %38 : vector<16x1xf32> to vector<16x256xf32>
    %46 = arith.mulf %35, %45 : vector<16x256xf32>
    %cst_14 = arith.constant 0.000000e+00 : f32
    %cst_15 = arith.constant 1.000000e+00 : f32
    %47 = vector.broadcast %cst_14 : f32 to vector<16x256xf32>
    %48 = arith.maximumf %47, %46 : vector<16x256xf32>
    %49 = vector.broadcast %cst_15 : f32 to vector<16x256xf32>
    %50 = arith.minimumf %49, %48 : vector<16x256xf32>
    %51 = vector.broadcast %38 : vector<16x1xf32> to vector<16x256xf32>
    %52 = arith.mulf %36, %51 : vector<16x256xf32>
    %cst_16 = arith.constant 0.000000e+00 : f32
    %cst_17 = arith.constant 1.000000e+00 : f32
    %53 = vector.broadcast %cst_16 : f32 to vector<16x256xf32>
    %54 = arith.maximumf %53, %52 : vector<16x256xf32>
    %55 = vector.broadcast %cst_17 : f32 to vector<16x256xf32>
    %56 = arith.minimumf %55, %54 : vector<16x256xf32>
    %57 = vector.broadcast %38 : vector<16x1xf32> to vector<16x256xf32>
    %58 = arith.mulf %37, %57 : vector<16x256xf32>
    %cst_18 = arith.constant 0.000000e+00 : f32
    %cst_19 = arith.constant 1.000000e+00 : f32
    %59 = vector.broadcast %cst_18 : f32 to vector<16x256xf32>
    %60 = arith.maximumf %59, %58 : vector<16x256xf32>
    %61 = vector.broadcast %cst_19 : f32 to vector<16x256xf32>
    %62 = arith.minimumf %61, %60 : vector<16x256xf32>
    %cst_20 = arith.constant 2.990000e-01 : f32
    %63 = vector.broadcast %cst_20 : f32 to vector<16x256xf32>
    %64 = arith.mulf %63, %50 : vector<16x256xf32>
    %cst_21 = arith.constant 5.870000e-01 : f32
    %65 = vector.broadcast %cst_21 : f32 to vector<16x256xf32>
    %66 = arith.mulf %65, %56 : vector<16x256xf32>
    %67 = arith.addf %64, %66 : vector<16x256xf32>
    %cst_22 = arith.constant 1.140000e-01 : f32
    %68 = vector.broadcast %cst_22 : f32 to vector<16x256xf32>
    %69 = arith.mulf %68, %62 : vector<16x256xf32>
    %70 = arith.addf %67, %69 : vector<16x256xf32>
    %cst_23 = arith.constant dense<0.000000e+00> : vector<16xf32>
    %71 = vector.multi_reduction <add>, %70, %cst_23 [1] : vector<16x256xf32> to vector<16xf32>
    %72 = vector.shape_cast %71 : vector<16xf32> to vector<16x1xf32>
    %cst_24 = arith.constant 2.560000e+02 : f32
    %73 = vector.broadcast %cst_24 : f32 to vector<16x1xf32>
    %74 = arith.divf %72, %73 : vector<16x1xf32>
    %75 = vector.broadcast %39 : vector<16x1xf32> to vector<16x256xf32>
    %76 = arith.mulf %75, %50 : vector<16x256xf32>
    %cst_25 = arith.constant 1.000000e+00 : f32
    %77 = vector.broadcast %cst_25 : f32 to vector<16x1xf32>
    %78 = arith.subf %77, %39 : vector<16x1xf32>
    %79 = arith.mulf %78, %74 : vector<16x1xf32>
    %80 = vector.broadcast %79 : vector<16x1xf32> to vector<16x256xf32>
    %81 = arith.addf %76, %80 : vector<16x256xf32>
    %cst_26 = arith.constant 0.000000e+00 : f32
    %cst_27 = arith.constant 1.000000e+00 : f32
    %82 = vector.broadcast %cst_26 : f32 to vector<16x256xf32>
    %83 = arith.maximumf %82, %81 : vector<16x256xf32>
    %84 = vector.broadcast %cst_27 : f32 to vector<16x256xf32>
    %85 = arith.minimumf %84, %83 : vector<16x256xf32>
    %86 = vector.broadcast %39 : vector<16x1xf32> to vector<16x256xf32>
    %87 = arith.mulf %86, %56 : vector<16x256xf32>
    %cst_28 = arith.constant 1.000000e+00 : f32
    %88 = vector.broadcast %cst_28 : f32 to vector<16x1xf32>
    %89 = arith.subf %88, %39 : vector<16x1xf32>
    %90 = arith.mulf %89, %74 : vector<16x1xf32>
    %91 = vector.broadcast %90 : vector<16x1xf32> to vector<16x256xf32>
    %92 = arith.addf %87, %91 : vector<16x256xf32>
    %cst_29 = arith.constant 0.000000e+00 : f32
    %cst_30 = arith.constant 1.000000e+00 : f32
    %93 = vector.broadcast %cst_29 : f32 to vector<16x256xf32>
    %94 = arith.maximumf %93, %92 : vector<16x256xf32>
    %95 = vector.broadcast %cst_30 : f32 to vector<16x256xf32>
    %96 = arith.minimumf %95, %94 : vector<16x256xf32>
    %97 = vector.broadcast %39 : vector<16x1xf32> to vector<16x256xf32>
    %98 = arith.mulf %97, %62 : vector<16x256xf32>
    %cst_31 = arith.constant 1.000000e+00 : f32
    %99 = vector.broadcast %cst_31 : f32 to vector<16x1xf32>
    %100 = arith.subf %99, %39 : vector<16x1xf32>
    %101 = arith.mulf %100, %74 : vector<16x1xf32>
    %102 = vector.broadcast %101 : vector<16x1xf32> to vector<16x256xf32>
    %103 = arith.addf %98, %102 : vector<16x256xf32>
    %cst_32 = arith.constant 0.000000e+00 : f32
    %cst_33 = arith.constant 1.000000e+00 : f32
    %104 = vector.broadcast %cst_32 : f32 to vector<16x256xf32>
    %105 = arith.maximumf %104, %103 : vector<16x256xf32>
    %106 = vector.broadcast %cst_33 : f32 to vector<16x256xf32>
    %107 = arith.minimumf %106, %105 : vector<16x256xf32>
    %cst_34 = arith.constant 2.990000e-01 : f32
    %108 = vector.broadcast %cst_34 : f32 to vector<16x256xf32>
    %109 = arith.mulf %108, %85 : vector<16x256xf32>
    %cst_35 = arith.constant 5.870000e-01 : f32
    %110 = vector.broadcast %cst_35 : f32 to vector<16x256xf32>
    %111 = arith.mulf %110, %96 : vector<16x256xf32>
    %112 = arith.addf %109, %111 : vector<16x256xf32>
    %cst_36 = arith.constant 1.140000e-01 : f32
    %113 = vector.broadcast %cst_36 : f32 to vector<16x256xf32>
    %114 = arith.mulf %113, %107 : vector<16x256xf32>
    %115 = arith.addf %112, %114 : vector<16x256xf32>
    %116 = vector.broadcast %40 : vector<16x1xf32> to vector<16x256xf32>
    %117 = arith.mulf %116, %85 : vector<16x256xf32>
    %cst_37 = arith.constant 1.000000e+00 : f32
    %118 = vector.broadcast %cst_37 : f32 to vector<16x1xf32>
    %119 = arith.subf %118, %40 : vector<16x1xf32>
    %120 = vector.broadcast %119 : vector<16x1xf32> to vector<16x256xf32>
    %121 = arith.mulf %120, %115 : vector<16x256xf32>
    %122 = arith.addf %117, %121 : vector<16x256xf32>
    %cst_38 = arith.constant 0.000000e+00 : f32
    %cst_39 = arith.constant 1.000000e+00 : f32
    %123 = vector.broadcast %cst_38 : f32 to vector<16x256xf32>
    %124 = arith.maximumf %123, %122 : vector<16x256xf32>
    %125 = vector.broadcast %cst_39 : f32 to vector<16x256xf32>
    %126 = arith.minimumf %125, %124 : vector<16x256xf32>
    %127 = vector.broadcast %40 : vector<16x1xf32> to vector<16x256xf32>
    %128 = arith.mulf %127, %96 : vector<16x256xf32>
    %cst_40 = arith.constant 1.000000e+00 : f32
    %129 = vector.broadcast %cst_40 : f32 to vector<16x1xf32>
    %130 = arith.subf %129, %40 : vector<16x1xf32>
    %131 = vector.broadcast %130 : vector<16x1xf32> to vector<16x256xf32>
    %132 = arith.mulf %131, %115 : vector<16x256xf32>
    %133 = arith.addf %128, %132 : vector<16x256xf32>
    %cst_41 = arith.constant 0.000000e+00 : f32
    %cst_42 = arith.constant 1.000000e+00 : f32
    %134 = vector.broadcast %cst_41 : f32 to vector<16x256xf32>
    %135 = arith.maximumf %134, %133 : vector<16x256xf32>
    %136 = vector.broadcast %cst_42 : f32 to vector<16x256xf32>
    %137 = arith.minimumf %136, %135 : vector<16x256xf32>
    %138 = vector.broadcast %40 : vector<16x1xf32> to vector<16x256xf32>
    %139 = arith.mulf %138, %107 : vector<16x256xf32>
    %cst_43 = arith.constant 1.000000e+00 : f32
    %140 = vector.broadcast %cst_43 : f32 to vector<16x1xf32>
    %141 = arith.subf %140, %40 : vector<16x1xf32>
    %142 = vector.broadcast %141 : vector<16x1xf32> to vector<16x256xf32>
    %143 = arith.mulf %142, %115 : vector<16x256xf32>
    %144 = arith.addf %139, %143 : vector<16x256xf32>
    %cst_44 = arith.constant 0.000000e+00 : f32
    %cst_45 = arith.constant 1.000000e+00 : f32
    %145 = vector.broadcast %cst_44 : f32 to vector<16x256xf32>
    %146 = arith.maximumf %145, %144 : vector<16x256xf32>
    %147 = vector.broadcast %cst_45 : f32 to vector<16x256xf32>
    %148 = arith.minimumf %147, %146 : vector<16x256xf32>
    %149 = arith.maximumf %126, %137 : vector<16x256xf32>
    %150 = arith.maximumf %149, %148 : vector<16x256xf32>
    %151 = arith.minimumf %126, %137 : vector<16x256xf32>
    %152 = arith.minimumf %151, %148 : vector<16x256xf32>
    %153 = arith.subf %150, %152 : vector<16x256xf32>
    %cst_46 = arith.constant 9.99999993E-9 : f32
    %154 = vector.broadcast %cst_46 : f32 to vector<16x256xf32>
    %155 = arith.addf %150, %154 : vector<16x256xf32>
    %156 = tpu.reciprocal %155 {approx = true} : vector<16x256xf32> -> vector<16x256xf32>
    %cst_47 = arith.constant 9.99999993E-9 : f32
    %157 = vector.broadcast %cst_47 : f32 to vector<16x256xf32>
    %158 = arith.addf %153, %157 : vector<16x256xf32>
    %159 = tpu.reciprocal %158 {approx = true} : vector<16x256xf32> -> vector<16x256xf32>
    %160 = arith.mulf %153, %156 : vector<16x256xf32>
    %161 = arith.subf %150, %126 : vector<16x256xf32>
    %162 = arith.mulf %161, %159 : vector<16x256xf32>
    %163 = arith.subf %150, %137 : vector<16x256xf32>
    %164 = arith.mulf %163, %159 : vector<16x256xf32>
    %165 = arith.subf %150, %148 : vector<16x256xf32>
    %166 = arith.mulf %165, %159 : vector<16x256xf32>
    %167 = arith.cmpf oeq, %150, %126 : vector<16x256xf32>
    %168 = arith.subf %166, %164 : vector<16x256xf32>
    %169 = arith.cmpf oeq, %150, %137 : vector<16x256xf32>
    %cst_48 = arith.constant 2.000000e+00 : f32
    %170 = vector.broadcast %cst_48 : f32 to vector<16x256xf32>
    %171 = arith.addf %170, %162 : vector<16x256xf32>
    %172 = arith.subf %171, %166 : vector<16x256xf32>
    %cst_49 = arith.constant 4.000000e+00 : f32
    %173 = vector.broadcast %cst_49 : f32 to vector<16x256xf32>
    %174 = arith.addf %173, %164 : vector<16x256xf32>
    %175 = arith.subf %174, %162 : vector<16x256xf32>
    %176 = arith.select %169, %172, %175 : vector<16x256xi1>, vector<16x256xf32>
    %177 = arith.select %167, %168, %176 : vector<16x256xi1>, vector<16x256xf32>
    %cst_50 = arith.constant 0.166666672 : f32
    %178 = vector.broadcast %cst_50 : f32 to vector<16x256xf32>
    %179 = arith.mulf %177, %178 : vector<16x256xf32>
    %180 = math.floor %179 : vector<16x256xf32>
    %181 = arith.subf %179, %180 : vector<16x256xf32>
    %182 = vector.broadcast %41 : vector<16x1xf32> to vector<16x256xf32>
    %183 = arith.addf %181, %182 : vector<16x256xf32>
    %184 = math.floor %183 : vector<16x256xf32>
    %185 = arith.subf %183, %184 : vector<16x256xf32>
    %cst_51 = arith.constant 6.000000e+00 : f32
    %186 = vector.broadcast %cst_51 : f32 to vector<16x256xf32>
    %187 = arith.mulf %185, %186 : vector<16x256xf32>
    %188 = math.floor %187 : vector<16x256xf32>
    %189 = arith.subf %187, %188 : vector<16x256xf32>
    %cst_52 = arith.constant 1.000000e+00 : f32
    %190 = vector.broadcast %cst_52 : f32 to vector<16x256xf32>
    %191 = arith.subf %190, %160 : vector<16x256xf32>
    %192 = arith.mulf %150, %191 : vector<16x256xf32>
    %193 = arith.mulf %189, %160 : vector<16x256xf32>
    %cst_53 = arith.constant 1.000000e+00 : f32
    %194 = vector.broadcast %cst_53 : f32 to vector<16x256xf32>
    %195 = arith.subf %194, %193 : vector<16x256xf32>
    %196 = arith.mulf %150, %195 : vector<16x256xf32>
    %cst_54 = arith.constant 1.000000e+00 : f32
    %197 = vector.broadcast %cst_54 : f32 to vector<16x256xf32>
    %198 = arith.subf %197, %189 : vector<16x256xf32>
    %199 = arith.mulf %198, %160 : vector<16x256xf32>
    %cst_55 = arith.constant 1.000000e+00 : f32
    %200 = vector.broadcast %cst_55 : f32 to vector<16x256xf32>
    %201 = arith.subf %200, %199 : vector<16x256xf32>
    %202 = arith.mulf %150, %201 : vector<16x256xf32>
    %cst_56 = arith.constant 0.166666672 : f32
    %203 = vector.broadcast %cst_56 : f32 to vector<16x256xf32>
    %204 = arith.mulf %188, %203 : vector<16x256xf32>
    %205 = math.floor %204 : vector<16x256xf32>
    %cst_57 = arith.constant 6.000000e+00 : f32
    %206 = vector.broadcast %cst_57 : f32 to vector<16x256xf32>
    %207 = arith.mulf %206, %205 : vector<16x256xf32>
    %208 = arith.subf %188, %207 : vector<16x256xf32>
    %cst_58 = arith.constant 0.000000e+00 : f32
    %209 = vector.broadcast %cst_58 : f32 to vector<16x256xf32>
    %210 = arith.cmpf oeq, %208, %209 : vector<16x256xf32>
    %cst_59 = arith.constant 1.000000e+00 : f32
    %211 = vector.broadcast %cst_59 : f32 to vector<16x256xf32>
    %212 = arith.cmpf oeq, %208, %211 : vector<16x256xf32>
    %cst_60 = arith.constant 2.000000e+00 : f32
    %213 = vector.broadcast %cst_60 : f32 to vector<16x256xf32>
    %214 = arith.cmpf oeq, %208, %213 : vector<16x256xf32>
    %cst_61 = arith.constant 3.000000e+00 : f32
    %215 = vector.broadcast %cst_61 : f32 to vector<16x256xf32>
    %216 = arith.cmpf oeq, %208, %215 : vector<16x256xf32>
    %cst_62 = arith.constant 4.000000e+00 : f32
    %217 = vector.broadcast %cst_62 : f32 to vector<16x256xf32>
    %218 = arith.cmpf oeq, %208, %217 : vector<16x256xf32>
    %219 = arith.select %218, %202, %150 : vector<16x256xi1>, vector<16x256xf32>
    %220 = arith.select %216, %192, %219 : vector<16x256xi1>, vector<16x256xf32>
    %221 = arith.select %214, %192, %220 : vector<16x256xi1>, vector<16x256xf32>
    %222 = arith.select %212, %196, %221 : vector<16x256xi1>, vector<16x256xf32>
    %223 = arith.select %210, %150, %222 : vector<16x256xi1>, vector<16x256xf32>
    %cst_63 = arith.constant 0.000000e+00 : f32
    %224 = vector.broadcast %cst_63 : f32 to vector<16x256xf32>
    %225 = arith.cmpf oeq, %208, %224 : vector<16x256xf32>
    %cst_64 = arith.constant 1.000000e+00 : f32
    %226 = vector.broadcast %cst_64 : f32 to vector<16x256xf32>
    %227 = arith.cmpf oeq, %208, %226 : vector<16x256xf32>
    %cst_65 = arith.constant 2.000000e+00 : f32
    %228 = vector.broadcast %cst_65 : f32 to vector<16x256xf32>
    %229 = arith.cmpf oeq, %208, %228 : vector<16x256xf32>
    %cst_66 = arith.constant 3.000000e+00 : f32
    %230 = vector.broadcast %cst_66 : f32 to vector<16x256xf32>
    %231 = arith.cmpf oeq, %208, %230 : vector<16x256xf32>
    %cst_67 = arith.constant 4.000000e+00 : f32
    %232 = vector.broadcast %cst_67 : f32 to vector<16x256xf32>
    %233 = arith.cmpf oeq, %208, %232 : vector<16x256xf32>
    %234 = arith.select %233, %192, %192 : vector<16x256xi1>, vector<16x256xf32>
    %235 = arith.select %231, %196, %234 : vector<16x256xi1>, vector<16x256xf32>
    %236 = arith.select %229, %150, %235 : vector<16x256xi1>, vector<16x256xf32>
    %237 = arith.select %227, %150, %236 : vector<16x256xi1>, vector<16x256xf32>
    %238 = arith.select %225, %202, %237 : vector<16x256xi1>, vector<16x256xf32>
    %cst_68 = arith.constant 0.000000e+00 : f32
    %239 = vector.broadcast %cst_68 : f32 to vector<16x256xf32>
    %240 = arith.cmpf oeq, %208, %239 : vector<16x256xf32>
    %cst_69 = arith.constant 1.000000e+00 : f32
    %241 = vector.broadcast %cst_69 : f32 to vector<16x256xf32>
    %242 = arith.cmpf oeq, %208, %241 : vector<16x256xf32>
    %cst_70 = arith.constant 2.000000e+00 : f32
    %243 = vector.broadcast %cst_70 : f32 to vector<16x256xf32>
    %244 = arith.cmpf oeq, %208, %243 : vector<16x256xf32>
    %cst_71 = arith.constant 3.000000e+00 : f32
    %245 = vector.broadcast %cst_71 : f32 to vector<16x256xf32>
    %246 = arith.cmpf oeq, %208, %245 : vector<16x256xf32>
    %cst_72 = arith.constant 4.000000e+00 : f32
    %247 = vector.broadcast %cst_72 : f32 to vector<16x256xf32>
    %248 = arith.cmpf oeq, %208, %247 : vector<16x256xf32>
    %249 = arith.select %248, %150, %196 : vector<16x256xi1>, vector<16x256xf32>
    %250 = arith.select %246, %150, %249 : vector<16x256xi1>, vector<16x256xf32>
    %251 = arith.select %244, %202, %250 : vector<16x256xi1>, vector<16x256xf32>
    %252 = arith.select %242, %192, %251 : vector<16x256xi1>, vector<16x256xf32>
    %253 = arith.select %240, %192, %252 : vector<16x256xi1>, vector<16x256xf32>
    %cst_73 = arith.constant 0.000000e+00 : f32
    %cst_74 = arith.constant 1.000000e+00 : f32
    %254 = vector.broadcast %cst_73 : f32 to vector<16x256xf32>
    %255 = arith.maximumf %254, %223 : vector<16x256xf32>
    %256 = vector.broadcast %cst_74 : f32 to vector<16x256xf32>
    %257 = arith.minimumf %256, %255 : vector<16x256xf32>
    %cst_75 = arith.constant 0.000000e+00 : f32
    %cst_76 = arith.constant 1.000000e+00 : f32
    %258 = vector.broadcast %cst_75 : f32 to vector<16x256xf32>
    %259 = arith.maximumf %258, %238 : vector<16x256xf32>
    %260 = vector.broadcast %cst_76 : f32 to vector<16x256xf32>
    %261 = arith.minimumf %260, %259 : vector<16x256xf32>
    %cst_77 = arith.constant 0.000000e+00 : f32
    %cst_78 = arith.constant 1.000000e+00 : f32
    %262 = vector.broadcast %cst_77 : f32 to vector<16x256xf32>
    %263 = arith.maximumf %262, %253 : vector<16x256xf32>
    %264 = vector.broadcast %cst_78 : f32 to vector<16x256xf32>
    %265 = arith.minimumf %264, %263 : vector<16x256xf32>
    %266 = vector.shape_cast %44 : vector<16x1xi1> to vector<16x1xi1>
    %267 = vector.broadcast %266 : vector<16x1xi1> to vector<16x256xi1>
    %268 = arith.select %267, %257, %35 : vector<16x256xi1>, vector<16x256xf32>
    %269 = vector.shape_cast %44 : vector<16x1xi1> to vector<16x1xi1>
    %270 = vector.broadcast %269 : vector<16x1xi1> to vector<16x256xi1>
    %271 = arith.select %270, %261, %36 : vector<16x256xi1>, vector<16x256xf32>
    %272 = vector.shape_cast %44 : vector<16x1xi1> to vector<16x1xi1>
    %273 = vector.broadcast %272 : vector<16x1xi1> to vector<16x256xi1>
    %274 = arith.select %273, %265, %37 : vector<16x256xi1>, vector<16x256xf32>
    %275 = vector.extract_strided_slice %268 {offsets = [0, 0], sizes = [8, 256], strides = [1, 1]} : vector<16x256xf32> to vector<8x256xf32>
    %c0_79 = arith.constant 0 : index
    %c0_80 = arith.constant 0 : index
    %276 = vector.load %arg5[%c0_79, %c0_80] : memref<8x768xf32, #tpu.memory_space<vmem>>, vector<8x256xf32>
    tpu.vector_store %arg5[%c0_79, %c0_80], %275 {strides = array<i32>} : memref<8x768xf32, #tpu.memory_space<vmem>>, vector<8x256xf32>,
    %277 = vector.extract_strided_slice %271 {offsets = [0, 0], sizes = [8, 256], strides = [1, 1]} : vector<16x256xf32> to vector<8x256xf32>
    %c0_81 = arith.constant 0 : index
    %c256 = arith.constant 256 : index
    %278 = vector.load %arg5[%c0_81, %c256] : memref<8x768xf32, #tpu.memory_space<vmem>>, vector<8x256xf32>
    tpu.vector_store %arg5[%c0_81, %c256], %277 {strides = array<i32>} : memref<8x768xf32, #tpu.memory_space<vmem>>, vector<8x256xf32>,
    %279 = vector.extract_strided_slice %274 {offsets = [0, 0], sizes = [8, 256], strides = [1, 1]} : vector<16x256xf32> to vector<8x256xf32>
    %c0_82 = arith.constant 0 : index
    %c512 = arith.constant 512 : index
    %280 = vector.load %arg5[%c0_82, %c512] : memref<8x768xf32, #tpu.memory_space<vmem>>, vector<8x256xf32>
    tpu.vector_store %arg5[%c0_82, %c512], %279 {strides = array<i32>} : memref<8x768xf32, #tpu.memory_space<vmem>>, vector<8x256xf32>,
    %281 = vector.extract_strided_slice %268 {offsets = [8, 0], sizes = [8, 256], strides = [1, 1]} : vector<16x256xf32> to vector<8x256xf32>
    %c0_83 = arith.constant 0 : index
    %c0_84 = arith.constant 0 : index
    %282 = vector.load %arg6[%c0_83, %c0_84] : memref<8x768xf32, #tpu.memory_space<vmem>>, vector<8x256xf32>
    tpu.vector_store %arg6[%c0_83, %c0_84], %281 {strides = array<i32>} : memref<8x768xf32, #tpu.memory_space<vmem>>, vector<8x256xf32>,
    %283 = vector.extract_strided_slice %271 {offsets = [8, 0], sizes = [8, 256], strides = [1, 1]} : vector<16x256xf32> to vector<8x256xf32>
    %c0_85 = arith.constant 0 : index
    %c256_86 = arith.constant 256 : index
    %284 = vector.load %arg6[%c0_85, %c256_86] : memref<8x768xf32, #tpu.memory_space<vmem>>, vector<8x256xf32>
    tpu.vector_store %arg6[%c0_85, %c256_86], %283 {strides = array<i32>} : memref<8x768xf32, #tpu.memory_space<vmem>>, vector<8x256xf32>,
    %285 = vector.extract_strided_slice %274 {offsets = [8, 0], sizes = [8, 256], strides = [1, 1]} : vector<16x256xf32> to vector<8x256xf32>
    %c0_87 = arith.constant 0 : index
    %c512_88 = arith.constant 512 : index
    %286 = vector.load %arg6[%c0_87, %c512_88] : memref<8x768xf32, #tpu.memory_space<vmem>>, vector<8x256xf32>
    tpu.vector_store %arg6[%c0_87, %c512_88], %285 {strides = array<i32>} : memref<8x768xf32, #tpu.memory_space<vmem>>, vector<8x256xf32>,
    return
  }
  func.func @transform_0(%arg0: i32) -> (i32, i32) {
    %c0_i32 = arith.constant 0 : i32
    %c0_i32_0 = arith.constant 0 : i32
    return %arg0, %c0_i32 : i32, i32
  }
  func.func @transform_1(%arg0: i32) -> (i32, i32, i32) {
    %c0_i32 = arith.constant 0 : i32
    %c0_i32_0 = arith.constant 0 : i32
    %c0_i32_1 = arith.constant 0 : i32
    %c0_i32_2 = arith.constant 0 : i32
    return %c0_i32, %c0_i32_0, %c0_i32_1 : i32, i32, i32
  }
  func.func @transform_2(%arg0: i32) -> (i32, i32) {
    %c0_i32 = arith.constant 0 : i32
    %c0_i32_0 = arith.constant 0 : i32
    return %arg0, %c0_i32 : i32, i32
  }
  func.func @transform_3(%arg0: i32) -> (i32, i32) {
    %c0_i32 = arith.constant 0 : i32
    %c0_i32_0 = arith.constant 0 : i32
    return %arg0, %c0_i32 : i32, i32
  }
  func.func @transform_4(%arg0: i32) -> (i32, i32) {
    %c0_i32 = arith.constant 0 : i32
    %c0_i32_0 = arith.constant 0 : i32
    return %arg0, %c0_i32 : i32, i32
  }
  func.func @transform_5(%arg0: i32) -> (i32, i32) {
    %c0_i32 = arith.constant 0 : i32
    %c0_i32_0 = arith.constant 0 : i32
    return %arg0, %c0_i32 : i32, i32
  }
}

</mosaic_0001>

<llo_original>
// kernel: data_augmentation.1
$region0: #{data_augmentation.1}
  #allocation0 [shape = 'u32[]', space=smem, size = 0x4, offset = 0x4, fixed_abs, tag = 'smem constant byte address 0x4 - core index']
  #allocation1 [shape = 'u32[144,128]{1,0:T(1,128)}', space=vmem, size = 0x12000, scoped, tag = 'internal scratch']
  %s0 = inlined_call_operand.vmem [shape: f32[16,8], index: 0, kind: input, shape index: {}]
  %s1 = inlined_call_operand.vmem [shape: f32[2,256,256], index: 1, kind: input, shape index: {}]
  %s2 = inlined_call_operand.vmem [shape: f32[16,768], index: 2, kind: input, shape index: {}]
  %s3 = inlined_call_operand.vmem [shape: f32[16,768], index: 3, kind: input, shape index: {}]
  %s4 = inlined_call_operand.vmem [shape: f32[16,768], index: 4, kind: output, shape index: {0}]
  %s5 = inlined_call_operand.vmem [shape: f32[16,768], index: 5, kind: output, shape index: {1}]
  %6 = xla_tuple %s4, %s5
  %s7 = sld [smem:[#allocation0]]
  $region57: #{data_augmentation.1} parent=0
    _
  %s9 = ssub.s32 1, %s7
  %s10 = scalar_select 0, %s9, %s7
  loop: start=0, step=1, limit=4
  $region2: #{data_augmentation.1} parent=0 // loop_pre_header
    _
  $region3: #{data_augmentation.1} parent=0 // loop_header
    %s12 = sphi 0, %s16
    %p13 = scmp.ge.s32.totalorder %s12, 4
    %s22 = sphi 0, %s24
    %s25 = sphi 0, %s22
    %s26 = sphi 0, %s25
    %s42 = sphi 0, %s26
    %s46 = sphi 0, %s46
    %s48 = sphi 0, %s46
    %s49 = sphi 0, %s48
    %s63 = sphi 0, %s49
    %s69 = sphi 0, %s71
    %s72 = sphi 0, %s69
    %s73 = sphi 0, %s72
    %s89 = sphi 0, %s73
    %s95 = sphi 0, %s97
    %s98 = sphi 0, %s95
    %s99 = sphi 0, %s98
    %s115 = sphi 0, %s99
    %s121 = sphi 0, %s123
    %s124 = sphi 0, %s121
    %s125 = sphi 0, %s124
    %s141 = sphi 0, %s125
    %s147 = sphi 0, %s149
    %s150 = sphi 0, %s147
    %s151 = sphi 0, %s150
    %s167 = sphi 0, %s151
  $region4: #{data_augmentation.1} parent=0 // loop_header_branch
    %15 = sbr.rel (%p13) target = $region8
  $region5: #{data_augmentation.1} parent=0 // loop_body
    %s17 = ssub.s32 %s12, 1
    %s18 = ssub.s32 %s12, 2
    %s19 = sadd.s32 %s12, 1
    %s20 = ssub.s32 %s12, %s19
    %p21 = scmp.eq.s32.totalorder %s20, 0
    %s23 = sadd.s32 %s22, 1
    %s24 = scalar_select %p21, %s22, %s23
    %p27 = pneg %p21
    %p28 = scmp.eq.s32.totalorder %s12, 1
    %p29 = por %p27, %p28
    %p30 = scmp.ne.s32.totalorder %s22, %s25
    %p31 = scmp.eq.s32.totalorder %s12, 0
    %p32 = por %p30, %p31
    %p33 = scmp.ne.s32.totalorder %s22, %s25
    %p34 = scmp.eq.s32.totalorder %s17, 1
    %p35 = por %p33, %p34
    %p36 = scmp.ne.s32.totalorder %s25, %s26
    %p37 = scmp.eq.s32.totalorder %s17, 0
    %p38 = por %p36, %p37
    %p39 = scmp.ne.s32.totalorder %s25, %s26
    %p40 = scmp.eq.s32.totalorder %s18, 1
    %p41 = por %p39, %p40
    %p43 = scmp.ne.s32.totalorder %s26, %s42
    %p44 = scmp.eq.s32.totalorder %s18, 0
    %p45 = por %p43, %p44
    %s47 = sadd.s32 %s46, 1
    %p50 = scmp.eq.s32.totalorder %s12, 1
    %p51 = scmp.ne.s32.totalorder %s46, %s48
    %p52 = scmp.eq.s32.totalorder %s12, 0
    %p53 = por %p51, %p52
    %p54 = scmp.ne.s32.totalorder %s46, %s48
    %p55 = scmp.eq.s32.totalorder %s17, 1
    %p56 = por %p54, %p55
    %p57 = scmp.ne.s32.totalorder %s48, %s49
    %p58 = scmp.eq.s32.totalorder %s17, 0
    %p59 = por %p57, %p58
    %p60 = scmp.ne.s32.totalorder %s48, %s49
    %p61 = scmp.eq.s32.totalorder %s18, 1
    %p62 = por %p60, %p61
    %p64 = scmp.ne.s32.totalorder %s49, %s63
    %p65 = scmp.eq.s32.totalorder %s18, 0
    %p66 = por %p64, %p65
    %s67 = ssub.s32 %s12, %s19
    %p68 = scmp.eq.s32.totalorder %s67, 0
    %s70 = sadd.s32 %s69, 1
    %s71 = scalar_select %p68, %s69, %s70
    %p74 = pneg %p68
    %p75 = scmp.eq.s32.totalorder %s12, 1
    %p76 = por %p74, %p75
    %p77 = scmp.ne.s32.totalorder %s69, %s72
    %p78 = scmp.eq.s32.totalorder %s12, 0
    %p79 = por %p77, %p78
    %p80 = scmp.ne.s32.totalorder %s69, %s72
    %p81 = scmp.eq.s32.totalorder %s17, 1
    %p82 = por %p80, %p81
    %p83 = scmp.ne.s32.totalorder %s72, %s73
    %p84 = scmp.eq.s32.totalorder %s17, 0
    %p85 = por %p83, %p84
    %p86 = scmp.ne.s32.totalorder %s72, %s73
    %p87 = scmp.eq.s32.totalorder %s18, 1
    %p88 = por %p86, %p87
    %p90 = scmp.ne.s32.totalorder %s73, %s89
    %p91 = scmp.eq.s32.totalorder %s18, 0
    %p92 = por %p90, %p91
    %s93 = ssub.s32 %s12, %s19
    %p94 = scmp.eq.s32.totalorder %s93, 0
    %s96 = sadd.s32 %s95, 1
    %s97 = scalar_select %p94, %s95, %s96
    %p100 = pneg %p94
    %p101 = scmp.eq.s32.totalorder %s12, 1
    %p102 = por %p100, %p101
    %p103 = scmp.ne.s32.totalorder %s95, %s98
    %p104 = scmp.eq.s32.totalorder %s12, 0
    %p105 = por %p103, %p104
    %p106 = scmp.ne.s32.totalorder %s95, %s98
    %p107 = scmp.eq.s32.totalorder %s17, 1
    %p108 = por %p106, %p107
    %p109 = scmp.ne.s32.totalorder %s98, %s99
    %p110 = scmp.eq.s32.totalorder %s17, 0
    %p111 = por %p109, %p110
    %p112 = scmp.ne.s32.totalorder %s98, %s99
    %p113 = scmp.eq.s32.totalorder %s18, 1
    %p114 = por %p112, %p113
    %p116 = scmp.ne.s32.totalorder %s99, %s115
    %p117 = scmp.eq.s32.totalorder %s18, 0
    %p118 = por %p116, %p117
    %s119 = ssub.s32 %s12, %s19
    %p120 = scmp.eq.s32.totalorder %s119, 0
    %s122 = sadd.s32 %s121, 1
    %s123 = scalar_select %p120, %s121, %s122
    %p126 = pneg %p120
    %p127 = scmp.eq.s32.totalorder %s12, 1
    %p128 = por %p126, %p127
    %p129 = scmp.ne.s32.totalorder %s121, %s124
    %p130 = scmp.eq.s32.totalorder %s12, 0
    %p131 = por %p129, %p130
    %p132 = scmp.ne.s32.totalorder %s121, %s124
    %p133 = scmp.eq.s32.totalorder %s17, 1
    %p134 = por %p132, %p133
    %p135 = scmp.ne.s32.totalorder %s124, %s125
    %p136 = scmp.eq.s32.totalorder %s17, 0
    %p137 = por %p135, %p136
    %p138 = scmp.ne.s32.totalorder %s124, %s125
    %p139 = scmp.eq.s32.totalorder %s18, 1
    %p140 = por %p138, %p139
    %p142 = scmp.ne.s32.totalorder %s125, %s141
    %p143 = scmp.eq.s32.totalorder %s18, 0
    %p144 = por %p142, %p143
    %s145 = ssub.s32 %s12, %s19
    %p146 = scmp.eq.s32.totalorder %s145, 0
    %s148 = sadd.s32 %s147, 1
    %s149 = scalar_select %p146, %s147, %s148
    %p152 = pneg %p146
    %p153 = scmp.eq.s32.totalorder %s12, 1
    %p154 = por %p152, %p153
    %p155 = scmp.ne.s32.totalorder %s147, %s150
    %p156 = scmp.eq.s32.totalorder %s12, 0
    %p157 = por %p155, %p156
    %p158 = scmp.ne.s32.totalorder %s147, %s150
    %p159 = scmp.eq.s32.totalorder %s17, 1
    %p160 = por %p158, %p159
    %p161 = scmp.ne.s32.totalorder %s150, %s151
    %p162 = scmp.eq.s32.totalorder %s17, 0
    %p163 = por %p161, %p162
    %p164 = scmp.ne.s32.totalorder %s150, %s151
    %p165 = scmp.eq.s32.totalorder %s18, 1
    %p166 = por %p164, %p165
    %p168 = scmp.ne.s32.totalorder %s151, %s167
    %p169 = scmp.eq.s32.totalorder %s18, 0
    %p170 = por %p168, %p169
    %p171 = scmp.le.s32.totalorder 1, %s12
    %p172 = scmp.lt.s32.totalorder %s12, 3
    %p173 = pnand %p171, %p172
    %p174 = pneg %p173
    // Predicated region
    $region9: #{data_augmentation.1} parent=5 // pred_check
      _
    $region10: #{data_augmentation.1} parent=5 // pred_check_branch
      %176 = sbr.rel (%p173) target = $region12
    $region11: #{data_augmentation.1} parent=5 // pred_region
      %s177 = ssub.s32 %s12, 1
      // Predicated region
      $region13: #{data_augmentation.1} parent=11 // pred_check
        %p178 = pneg %p59
      $region14: #{data_augmentation.1} parent=11 // pred_check_branch
        %180 = sbr.rel (%p178) target = $region16
      $region15: #{data_augmentation.1} parent=11 // pred_region
        _
      $region16: #{data_augmentation.1} parent=11 // pred_fallthru
        _
    $region12: #{data_augmentation.1} parent=5 // pred_fallthru
      _
    %p181 = scmp.lt.s32.totalorder %s12, 2
    // Predicated region
    $region17: #{data_augmentation.1} parent=5 // pred_check
      %p182 = pneg %p181
    $region18: #{data_augmentation.1} parent=5 // pred_check_branch
      %184 = sbr.rel (%p182) target = $region20
    $region19: #{data_augmentation.1} parent=5 // pred_region
      // Predicated region
      $region21: #{data_augmentation.1} parent=19 // pred_check
        %p185 = pneg %p32
      $region22: #{data_augmentation.1} parent=19 // pred_check_branch
        %187 = sbr.rel (%p185) target = $region24
      $region23: #{data_augmentation.1} parent=19 // pred_region
        %p188 = scmp.lt.s32.totalorder %s12, 1
        %s189 = scalar_select %p188, %s12, 1
        %s190 = smul.addr %s189, 8
        %s191 = scalar_lea.vmem %s0, %s190
      $region24: #{data_augmentation.1} parent=19 // pred_fallthru
        _
      // Predicated region
      $region25: #{data_augmentation.1} parent=19 // pred_check
        %p192 = pneg %p79
      $region26: #{data_augmentation.1} parent=19 // pred_check_branch
        %194 = sbr.rel (%p192) target = $region28
      $region27: #{data_augmentation.1} parent=19 // pred_region
        %p195 = scmp.lt.s32.totalorder %s12, 1
        %s196 = scalar_select %p195, %s12, 1
        %s197 = smul.addr %s196, 6
        %s198 = smul.addr %s197, 8
        %s199 = scalar_lea.vmem %s2, %s198
      $region28: #{data_augmentation.1} parent=19 // pred_fallthru
        _
      // Predicated region
      $region29: #{data_augmentation.1} parent=19 // pred_check
        %p200 = pneg %p105
      $region30: #{data_augmentation.1} parent=19 // pred_check_branch
        %202 = sbr.rel (%p200) target = $region32
      $region31: #{data_augmentation.1} parent=19 // pred_region
        %p203 = scmp.lt.s32.totalorder %s12, 1
        %s204 = scalar_select %p203, %s12, 1
        %s205 = smul.addr %s204, 6
        %s206 = smul.addr %s205, 8
        %s207 = scalar_lea.vmem %s3, %s206
      $region32: #{data_augmentation.1} parent=19 // pred_fallthru
        _
    $region20: #{data_augmentation.1} parent=5 // pred_fallthru
      _
    %p208 = scmp.le.s32.totalorder 1, %s12
    %p209 = scmp.lt.s32.totalorder %s12, 3
    %p210 = pnand %p208, %p209
    %p211 = pneg %p210
    // Predicated region
    $region33: #{data_augmentation.1} parent=5 // pred_check
      _
    $region34: #{data_augmentation.1} parent=5 // pred_check_branch
      %213 = sbr.rel (%p210) target = $region36
    $region35: #{data_augmentation.1} parent=5 // pred_region
      %s214 = ssub.s32 %s12, 1
      %p215 = scmp.lt.s32.totalorder %s17, 1
      %s216 = scalar_select %p215, %s17, 1
      %s217 = smul.addr %s216, 8
      %s218 = scalar_lea.vmem %s0, %s217
      %p219 = pneg %p38
      %p220 = pneg %p35
      %p221 = pneg %p59
      %p222 = pneg %p56
      %p223 = scmp.lt.s32.totalorder %s17, 1
      %s224 = scalar_select %p223, %s17, 1
      %s225 = smul.addr %s224, 6
      %s226 = smul.addr %s225, 8
      %s227 = scalar_lea.vmem %s2, %s226
      %p228 = pneg %p85
      %p229 = pneg %p82
      %p230 = scmp.lt.s32.totalorder %s17, 1
      %s231 = scalar_select %p230, %s17, 1
      %s232 = smul.addr %s231, 6
      %s233 = smul.addr %s232, 8
      %s234 = scalar_lea.vmem %s3, %s233
      %p235 = pneg %p111
      %p236 = pneg %p108
      %p237 = pneg %p137
      %p238 = pneg %p134
      %p239 = scmp.lt.s32.totalorder %s17, 1
      %s240 = scalar_select %p239, %s17, 1
      %s241 = smul.addr %s240, 6
      %s242 = smul.addr %s241, 8
      %s243 = scalar_lea.vmem %s4, %s242
      %p244 = pneg %p163
      %p245 = pneg %p160
      %p246 = scmp.lt.s32.totalorder %s17, 1
      %s247 = scalar_select %p246, %s17, 1
      %s248 = smul.addr %s247, 6
      %s249 = smul.addr %s248, 8
      %s250 = scalar_lea.vmem %s5, %s249
      %p251 = scmp.lt.s32.totalorder %s17, 1
      %s252 = scalar_select %p251, %s17, 1
      %s253 = smul.addr %s252, 8
      %s254 = scalar_lea.vmem %s0, %s253
      %p255 = scmp.lt.s32.totalorder %s17, 1
      %s256 = scalar_select %p255, %s17, 1
      %s257 = smul.addr %s256, 6
      %s258 = smul.addr %s257, 8
      %s259 = scalar_lea.vmem %s2, %s258
      %p260 = scmp.lt.s32.totalorder %s17, 1
      %s261 = scalar_select %p260, %s17, 1
      %s262 = smul.addr %s261, 6
      %s263 = smul.addr %s262, 8
      %s264 = scalar_lea.vmem %s3, %s263
      %p265 = scmp.lt.s32.totalorder %s17, 1
      %s266 = scalar_select %p265, %s17, 1
      %s267 = smul.addr %s266, 6
      %s268 = smul.addr %s267, 8
      %s269 = scalar_lea.vmem %s4, %s268
      %p270 = scmp.lt.s32.totalorder %s17, 1
      %s271 = scalar_select %p270, %s17, 1
      %s272 = smul.addr %s271, 6
      %s273 = smul.addr %s272, 8
      %s274 = scalar_lea.vmem %s5, %s273
      %v275 = vld [vmem:[%s254] sm:$0xff]
      %v276 = vld [vmem:[%s259] sm:$0xff]
      %v277 = vld [vmem:[%s259 + $0x8] sm:$0xff]
      %v278 = vld [vmem:[%s259 + $0x10] sm:$0xff]
      %v279 = vld [vmem:[%s259 + $0x18] sm:$0xff]
      %v280 = vld [vmem:[%s259 + $0x20] sm:$0xff]
      %v281 = vld [vmem:[%s259 + $0x28] sm:$0xff]
      %v282 = vld [vmem:[%s264] sm:$0xff]
      %v283 = vld [vmem:[%s264 + $0x8] sm:$0xff]
      %v284 = vld [vmem:[%s264 + $0x10] sm:$0xff]
      %v285 = vld [vmem:[%s264 + $0x18] sm:$0xff]
      %v286 = vld [vmem:[%s264 + $0x20] sm:$0xff]
      %v287 = vld [vmem:[%s264 + $0x28] sm:$0xff]
      %vm288 = vcmp.gt.f32.partialorder %v275, 0.5
      %v289 = vld [vmem:[%s1] sm:$0xff]
      %v290 = vld [vmem:[%s1 + $0x8] sm:$0xff]
      %v291 = vld [vmem:[%s1 + $0x10] sm:$0xff]
      %v292 = vld [vmem:[%s1 + $0x18] sm:$0xff]
      %v293 = vld [vmem:[%s1 + $0x20] sm:$0xff]
      %v294 = vld [vmem:[%s1 + $0x28] sm:$0xff]
      %v295 = vld [vmem:[%s1 + $0x30] sm:$0xff]
      %v296 = vld [vmem:[%s1 + $0x38] sm:$0xff]
      %v297 = vld [vmem:[%s1 + $0x40] sm:$0xff]
      %v298 = vld [vmem:[%s1 + $0x48] sm:$0xff]
      %v299 = vld [vmem:[%s1 + $0x50] sm:$0xff]
      %v300 = vld [vmem:[%s1 + $0x58] sm:$0xff]
      %v301 = vld [vmem:[%s1 + $0x60] sm:$0xff]
      %v302 = vld [vmem:[%s1 + $0x68] sm:$0xff]
      %v303 = vld [vmem:[%s1 + $0x70] sm:$0xff]
      %v304 = vld [vmem:[%s1 + $0x78] sm:$0xff]
      %v305 = vld [vmem:[%s1 + $0x80] sm:$0xff]
      %v306 = vld [vmem:[%s1 + $0x88] sm:$0xff]
      %v307 = vld [vmem:[%s1 + $0x90] sm:$0xff]
      %v308 = vld [vmem:[%s1 + $0x98] sm:$0xff]
      %v309 = vld [vmem:[%s1 + $0xa0] sm:$0xff]
      %v310 = vld [vmem:[%s1 + $0xa8] sm:$0xff]
      %v311 = vld [vmem:[%s1 + $0xb0] sm:$0xff]
      %v312 = vld [vmem:[%s1 + $0xb8] sm:$0xff]
      %v313 = vld [vmem:[%s1 + $0xc0] sm:$0xff]
      %v314 = vld [vmem:[%s1 + $0xc8] sm:$0xff]
      %v315 = vld [vmem:[%s1 + $0xd0] sm:$0xff]
      %v316 = vld [vmem:[%s1 + $0xd8] sm:$0xff]
      %v317 = vld [vmem:[%s1 + $0xe0] sm:$0xff]
      %v318 = vld [vmem:[%s1 + $0xe8] sm:$0xff]
      %v319 = vld [vmem:[%s1 + $0xf0] sm:$0xff]
      %v320 = vld [vmem:[%s1 + $0xf8] sm:$0xff]
      %v321 = vld [vmem:[%s1 + $0x100] sm:$0xff]
      %v322 = vld [vmem:[%s1 + $0x108] sm:$0xff]
      %v323 = vld [vmem:[%s1 + $0x110] sm:$0xff]
      %v324 = vld [vmem:[%s1 + $0x118] sm:$0xff]
      %v325 = vld [vmem:[%s1 + $0x120] sm:$0xff]
      %v326 = vld [vmem:[%s1 + $0x128] sm:$0xff]
      %v327 = vld [vmem:[%s1 + $0x130] sm:$0xff]
      %v328 = vld [vmem:[%s1 + $0x138] sm:$0xff]
      %v329 = vld [vmem:[%s1 + $0x140] sm:$0xff]
      %v330 = vld [vmem:[%s1 + $0x148] sm:$0xff]
      %v331 = vld [vmem:[%s1 + $0x150] sm:$0xff]
      %v332 = vld [vmem:[%s1 + $0x158] sm:$0xff]
      %v333 = vld [vmem:[%s1 + $0x160] sm:$0xff]
      %v334 = vld [vmem:[%s1 + $0x168] sm:$0xff]
      %v335 = vld [vmem:[%s1 + $0x170] sm:$0xff]
      %v336 = vld [vmem:[%s1 + $0x178] sm:$0xff]
      %v337 = vld [vmem:[%s1 + $0x180] sm:$0xff]
      %v338 = vld [vmem:[%s1 + $0x188] sm:$0xff]
      %v339 = vld [vmem:[%s1 + $0x190] sm:$0xff]
      %v340 = vld [vmem:[%s1 + $0x198] sm:$0xff]
      %v341 = vld [vmem:[%s1 + $0x1a0] sm:$0xff]
      %v342 = vld [vmem:[%s1 + $0x1a8] sm:$0xff]
      %v343 = vld [vmem:[%s1 + $0x1b0] sm:$0xff]
      %v344 = vld [vmem:[%s1 + $0x1b8] sm:$0xff]
      %v345 = vld [vmem:[%s1 + $0x1c0] sm:$0xff]
      %v346 = vld [vmem:[%s1 + $0x1c8] sm:$0xff]
      %v347 = vld [vmem:[%s1 + $0x1d0] sm:$0xff]
      %v348 = vld [vmem:[%s1 + $0x1d8] sm:$0xff]
      %v349 = vld [vmem:[%s1 + $0x1e0] sm:$0xff]
      %v350 = vld [vmem:[%s1 + $0x1e8] sm:$0xff]
      %v351 = vld [vmem:[%s1 + $0x1f0] sm:$0xff]
      %v352 = vld [vmem:[%s1 + $0x1f8] sm:$0xff]
      %353 = vmatprep.subr.mxu0 %v290
      %354 = vmatpush1.msra.mxu0 %v289
      %355 = vmatprep.subr.mxu0 %v292
      %356 = vmatpush1.msra.mxu0 %v291
      %357 = vmatprep.subr.mxu0 %v294
      %358 = vmatpush1.msra.mxu0 %v293
      %359 = vmatprep.subr.mxu0 %v296
      %360 = vmatpush1.msra.mxu0 %v295
      %361 = vmatprep.subr.mxu0 %v298
      %362 = vmatpush1.msra.mxu0 %v297
      %363 = vmatprep.subr.mxu0 %v300
      %364 = vmatpush1.msra.mxu0 %v299
      %365 = vmatprep.subr.mxu0 %v302
      %366 = vmatpush1.msra.mxu0 %v301
      %367 = vmatprep.subr.mxu0 %v304
      %368 = vmatpush1.msra.mxu0 %v303
      %369 = vmatprep.subr.mxu0 %v306
      %370 = vmatpush1.msra.mxu0 %v305
      %371 = vmatprep.subr.mxu0 %v308
      %372 = vmatpush1.msra.mxu0 %v307
      %373 = vmatprep.subr.mxu0 %v310
      %374 = vmatpush1.msra.mxu0 %v309
      %375 = vmatprep.subr.mxu0 %v312
      %376 = vmatpush1.msra.mxu0 %v311
      %377 = vmatprep.subr.mxu0 %v314
      %378 = vmatpush1.msra.mxu0 %v313
      %379 = vmatprep.subr.mxu0 %v316
      %380 = vmatpush1.msra.mxu0 %v315
      %381 = vmatprep.subr.mxu0 %v318
      %382 = vmatpush1.msra.mxu0 %v317
      %383 = vmatprep.subr.mxu0 %v320
      %384 = vmatpush1.msra.mxu0 %v319
      %385 = vmatprep.subr.mxu0 %v322
      %386 = vmatpush1.msra.mxu0 %v321
      %387 = vmatprep.subr.mxu0 %v324
      %388 = vmatpush1.msra.mxu0 %v323
      %389 = vmatprep.subr.mxu0 %v326
      %390 = vmatpush1.msra.mxu0 %v325
      %391 = vmatprep.subr.mxu0 %v328
      %392 = vmatpush1.msra.mxu0 %v327
      %393 = vmatprep.subr.mxu0 %v330
      %394 = vmatpush1.msra.mxu0 %v329
      %395 = vmatprep.subr.mxu0 %v332
      %396 = vmatpush1.msra.mxu0 %v331
      %397 = vmatprep.subr.mxu0 %v334
      %398 = vmatpush1.msra.mxu0 %v333
      %399 = vmatprep.subr.mxu0 %v336
      %400 = vmatpush1.msra.mxu0 %v335
      %401 = vmatprep.subr.mxu0 %v338
      %402 = vmatpush1.msra.mxu0 %v337
      %403 = vmatprep.subr.mxu0 %v340
      %404 = vmatpush1.msra.mxu0 %v339
      %405 = vmatprep.subr.mxu0 %v342
      %406 = vmatpush1.msra.mxu0 %v341
      %407 = vmatprep.subr.mxu0 %v344
      %408 = vmatpush1.msra.mxu0 %v343
      %409 = vmatprep.subr.mxu0 %v346
      %410 = vmatpush1.msra.mxu0 %v345
      %411 = vmatprep.subr.mxu0 %v348
      %412 = vmatpush1.msra.mxu0 %v347
      %413 = vmatprep.subr.mxu0 %v350
      %414 = vmatpush1.msra.mxu0 %v349
      %415 = vmatprep.subr.mxu0 %v352
      %416 = vmatpush1.msra.mxu0 %v351
      %417 = vmatprep.mubr.f32.mxu0 %v277
      %418 = vmatmul.mubr.f32.gmra.mrb[0].mxu0 %v276
      %v419 = vpop.f32.mrb[0].mxu0
      %v420 = vadd.f32 0.0, %v419
      %v421 = vpop.f32.mrb[0].mxu0
      %v422 = vadd.f32 0.0, %v421
      %423 = vmatprep.mubr.f32.mxu0 %v283
      %424 = vmatmul.mubr.f32.gmra.mrb[0].mxu0 %v282
      %v425 = vpop.f32.mrb[0].mxu0
      %v426 = vadd.f32 0.0, %v425
      %v427 = vpop.f32.mrb[0].mxu0
      %v428 = vadd.f32 0.0, %v427
      %429 = vmatprep.mubr.f32.mxu0 %v279
      %430 = vmatmul.mubr.f32.gmra.mrb[0].mxu0 %v278
      %v431 = vpop.f32.mrb[0].mxu0
      %v432 = vadd.f32 0.0, %v431
      %v433 = vpop.f32.mrb[0].mxu0
      %v434 = vadd.f32 0.0, %v433
      %435 = vmatprep.mubr.f32.mxu0 %v285
      %436 = vmatmul.mubr.f32.gmra.mrb[0].mxu0 %v284
      %v437 = vpop.f32.mrb[0].mxu0
      %v438 = vadd.f32 0.0, %v437
      %v439 = vpop.f32.mrb[0].mxu0
      %v440 = vadd.f32 0.0, %v439
      %441 = vmatprep.mubr.f32.mxu0 %v281
      %442 = vmatmul.mubr.f32.gmra.mrb[0].mxu0 %v280
      %v443 = vpop.f32.mrb[0].mxu0
      %v444 = vadd.f32 0.0, %v443
      %v445 = vpop.f32.mrb[0].mxu0
      %v446 = vadd.f32 0.0, %v445
      %447 = vmatprep.mubr.f32.mxu0 %v287
      %448 = vmatmul.mubr.f32.gmra.mrb[0].mxu0 %v286
      %v449 = vpop.f32.mrb[0].mxu0
      %v450 = vadd.f32 0.0, %v449
      %v451 = vpop.f32.mrb[0].mxu0
      %v452 = vadd.f32 0.0, %v451
      %453 = vdwg.mxu0
      %v454 = vsel %vm288, 1, 0
      %455 = vset.pattern.permute.xlu0 0
      %456 = vperm.xlu0 %455, %v454
      %v457 = vpop.permute.xlu0 %456
      %vm458 = vcmp.eq.s32.totalorder %v457, 1
      %v459 = vsel %vm458, %v420, %v276
      %v460 = vsel %vm458, %v422, %v277
      %v461 = vsel %vm458, %v426, %v282
      %v462 = vsel %vm458, %v428, %v283
      %v463 = vsel %vm458, %v432, %v278
      %v464 = vsel %vm458, %v434, %v279
      %v465 = vsel %vm458, %v438, %v284
      %v466 = vsel %vm458, %v440, %v285
      %v467 = vsel %vm458, %v444, %v280
      %v468 = vsel %vm458, %v446, %v281
      %v469 = vsel %vm458, %v450, %v286
      %v470 = vsel %vm458, %v452, %v287
      %s471 = scalar_lea.vmem %s1, 512
      %v472 = vld [vmem:[%s471] sm:$0xff]
      %v473 = vld [vmem:[%s471 + $0x8] sm:$0xff]
      %v474 = vld [vmem:[%s471 + $0x10] sm:$0xff]
      %v475 = vld [vmem:[%s471 + $0x18] sm:$0xff]
      %v476 = vld [vmem:[%s471 + $0x20] sm:$0xff]
      %v477 = vld [vmem:[%s471 + $0x28] sm:$0xff]
      %v478 = vld [vmem:[%s471 + $0x30] sm:$0xff]
      %v479 = vld [vmem:[%s471 + $0x38] sm:$0xff]
      %v480 = vld [vmem:[%s471 + $0x40] sm:$0xff]
      %v481 = vld [vmem:[%s471 + $0x48] sm:$0xff]
      %v482 = vld [vmem:[%s471 + $0x50] sm:$0xff]
      %v483 = vld [vmem:[%s471 + $0x58] sm:$0xff]
      %v484 = vld [vmem:[%s471 + $0x60] sm:$0xff]
      %v485 = vld [vmem:[%s471 + $0x68] sm:$0xff]
      %v486 = vld [vmem:[%s471 + $0x70] sm:$0xff]
      %v487 = vld [vmem:[%s471 + $0x78] sm:$0xff]
      %v488 = vld [vmem:[%s471 + $0x80] sm:$0xff]
      %v489 = vld [vmem:[%s471 + $0x88] sm:$0xff]
      %v490 = vld [vmem:[%s471 + $0x90] sm:$0xff]
      %v491 = vld [vmem:[%s471 + $0x98] sm:$0xff]
      %v492 = vld [vmem:[%s471 + $0xa0] sm:$0xff]
      %v493 = vld [vmem:[%s471 + $0xa8] sm:$0xff]
      %v494 = vld [vmem:[%s471 + $0xb0] sm:$0xff]
      %v495 = vld [vmem:[%s471 + $0xb8] sm:$0xff]
      %v496 = vld [vmem:[%s471 + $0xc0] sm:$0xff]
      %v497 = vld [vmem:[%s471 + $0xc8] sm:$0xff]
      %v498 = vld [vmem:[%s471 + $0xd0] sm:$0xff]
      %v499 = vld [vmem:[%s471 + $0xd8] sm:$0xff]
      %v500 = vld [vmem:[%s471 + $0xe0] sm:$0xff]
      %v501 = vld [vmem:[%s471 + $0xe8] sm:$0xff]
      %v502 = vld [vmem:[%s471 + $0xf0] sm:$0xff]
      %v503 = vld [vmem:[%s471 + $0xf8] sm:$0xff]
      %v504 = vld [vmem:[%s471 + $0x100] sm:$0xff]
      %v505 = vld [vmem:[%s471 + $0x108] sm:$0xff]
      %v506 = vld [vmem:[%s471 + $0x110] sm:$0xff]
      %v507 = vld [vmem:[%s471 + $0x118] sm:$0xff]
      %v508 = vld [vmem:[%s471 + $0x120] sm:$0xff]
      %v509 = vld [vmem:[%s471 + $0x128] sm:$0xff]
      %v510 = vld [vmem:[%s471 + $0x130] sm:$0xff]
      %v511 = vld [vmem:[%s471 + $0x138] sm:$0xff]
      %v512 = vld [vmem:[%s471 + $0x140] sm:$0xff]
      %v513 = vld [vmem:[%s471 + $0x148] sm:$0xff]
      %v514 = vld [vmem:[%s471 + $0x150] sm:$0xff]
      %v515 = vld [vmem:[%s471 + $0x158] sm:$0xff]
      %v516 = vld [vmem:[%s471 + $0x160] sm:$0xff]
      %v517 = vld [vmem:[%s471 + $0x168] sm:$0xff]
      %v518 = vld [vmem:[%s471 + $0x170] sm:$0xff]
      %v519 = vld [vmem:[%s471 + $0x178] sm:$0xff]
      %v520 = vld [vmem:[%s471 + $0x180] sm:$0xff]
      %v521 = vld [vmem:[%s471 + $0x188] sm:$0xff]
      %v522 = vld [vmem:[%s471 + $0x190] sm:$0xff]
      %v523 = vld [vmem:[%s471 + $0x198] sm:$0xff]
      %v524 = vld [vmem:[%s471 + $0x1a0] sm:$0xff]
      %v525 = vld [vmem:[%s471 + $0x1a8] sm:$0xff]
      %v526 = vld [vmem:[%s471 + $0x1b0] sm:$0xff]
      %v527 = vld [vmem:[%s471 + $0x1b8] sm:$0xff]
      %v528 = vld [vmem:[%s471 + $0x1c0] sm:$0xff]
      %v529 = vld [vmem:[%s471 + $0x1c8] sm:$0xff]
      %v530 = vld [vmem:[%s471 + $0x1d0] sm:$0xff]
      %v531 = vld [vmem:[%s471 + $0x1d8] sm:$0xff]
      %v532 = vld [vmem:[%s471 + $0x1e0] sm:$0xff]
      %v533 = vld [vmem:[%s471 + $0x1e8] sm:$0xff]
      %v534 = vld [vmem:[%s471 + $0x1f0] sm:$0xff]
      %v535 = vld [vmem:[%s471 + $0x1f8] sm:$0xff]
      %536 = vmatprep.subr.mxu0 %v473
      %537 = vmatpush1.msra.mxu0 %v472
      %538 = vmatprep.subr.mxu0 %v475
      %539 = vmatpush1.msra.mxu0 %v474
      %540 = vmatprep.subr.mxu0 %v477
      %541 = vmatpush1.msra.mxu0 %v476
      %542 = vmatprep.subr.mxu0 %v479
      %543 = vmatpush1.msra.mxu0 %v478
      %544 = vmatprep.subr.mxu0 %v481
      %545 = vmatpush1.msra.mxu0 %v480
      %546 = vmatprep.subr.mxu0 %v483
      %547 = vmatpush1.msra.mxu0 %v482
      %548 = vmatprep.subr.mxu0 %v485
      %549 = vmatpush1.msra.mxu0 %v484
      %550 = vmatprep.subr.mxu0 %v487
      %551 = vmatpush1.msra.mxu0 %v486
      %552 = vmatprep.subr.mxu0 %v489
      %553 = vmatpush1.msra.mxu0 %v488
      %554 = vmatprep.subr.mxu0 %v491
      %555 = vmatpush1.msra.mxu0 %v490
      %556 = vmatprep.subr.mxu0 %v493
      %557 = vmatpush1.msra.mxu0 %v492
      %558 = vmatprep.subr.mxu0 %v495
      %559 = vmatpush1.msra.mxu0 %v494
      %560 = vmatprep.subr.mxu0 %v497
      %561 = vmatpush1.msra.mxu0 %v496
      %562 = vmatprep.subr.mxu0 %v499
      %563 = vmatpush1.msra.mxu0 %v498
      %564 = vmatprep.subr.mxu0 %v501
      %565 = vmatpush1.msra.mxu0 %v500
      %566 = vmatprep.subr.mxu0 %v503
      %567 = vmatpush1.msra.mxu0 %v502
      %568 = vmatprep.subr.mxu0 %v505
      %569 = vmatpush1.msra.mxu0 %v504
      %570 = vmatprep.subr.mxu0 %v507
      %571 = vmatpush1.msra.mxu0 %v506
      %572 = vmatprep.subr.mxu0 %v509
      %573 = vmatpush1.msra.mxu0 %v508
      %574 = vmatprep.subr.mxu0 %v511
      %575 = vmatpush1.msra.mxu0 %v510
      %576 = vmatprep.subr.mxu0 %v513
      %577 = vmatpush1.msra.mxu0 %v512
      %578 = vmatprep.subr.mxu0 %v515
      %579 = vmatpush1.msra.mxu0 %v514
      %580 = vmatprep.subr.mxu0 %v517
      %581 = vmatpush1.msra.mxu0 %v516
      %582 = vmatprep.subr.mxu0 %v519
      %583 = vmatpush1.msra.mxu0 %v518
      %584 = vmatprep.subr.mxu0 %v521
      %585 = vmatpush1.msra.mxu0 %v520
      %586 = vmatprep.subr.mxu0 %v523
      %587 = vmatpush1.msra.mxu0 %v522
      %588 = vmatprep.subr.mxu0 %v525
      %589 = vmatpush1.msra.mxu0 %v524
      %590 = vmatprep.subr.mxu0 %v527
      %591 = vmatpush1.msra.mxu0 %v526
      %592 = vmatprep.subr.mxu0 %v529
      %593 = vmatpush1.msra.mxu0 %v528
      %594 = vmatprep.subr.mxu0 %v531
      %595 = vmatpush1.msra.mxu0 %v530
      %596 = vmatprep.subr.mxu0 %v533
      %597 = vmatpush1.msra.mxu0 %v532
      %598 = vmatprep.subr.mxu0 %v535
      %599 = vmatpush1.msra.mxu0 %v534
      %600 = vmatprep.mubr.f32.mxu0 %v460
      %601 = vmatmul.mubr.f32.gmra.mrb[0].mxu0 %v459
      %v602 = vpop.f32.mrb[0].mxu0
      %v603 = vadd.f32 0.0, %v602
      %v604 = vpop.f32.mrb[0].mxu0
      %v605 = vadd.f32 0.0, %v604
      %606 = vmatprep.mubr.f32.mxu0 %v462
      %607 = vmatmul.mubr.f32.gmra.mrb[0].mxu0 %v461
      %v608 = vpop.f32.mrb[0].mxu0
      %v609 = vadd.f32 0.0, %v608
      %v610 = vpop.f32.mrb[0].mxu0
      %v611 = vadd.f32 0.0, %v610
      %612 = vmatprep.mubr.f32.mxu0 %v464
      %613 = vmatmul.mubr.f32.gmra.mrb[0].mxu0 %v463
      %v614 = vpop.f32.mrb[0].mxu0
      %v615 = vadd.f32 0.0, %v614
      %v616 = vpop.f32.mrb[0].mxu0
      %v617 = vadd.f32 0.0, %v616
      %618 = vmatprep.mubr.f32.mxu0 %v466
      %619 = vmatmul.mubr.f32.gmra.mrb[0].mxu0 %v465
      %v620 = vpop.f32.mrb[0].mxu0
      %v621 = vadd.f32 0.0, %v620
      %v622 = vpop.f32.mrb[0].mxu0
      %v623 = vadd.f32 0.0, %v622
      %624 = vmatprep.mubr.f32.mxu0 %v468
      %625 = vmatmul.mubr.f32.gmra.mrb[0].mxu0 %v467
      %v626 = vpop.f32.mrb[0].mxu0
      %v627 = vadd.f32 0.0, %v626
      %v628 = vpop.f32.mrb[0].mxu0
      %v629 = vadd.f32 0.0, %v628
      %630 = vmatprep.mubr.f32.mxu0 %v470
      %631 = vmatmul.mubr.f32.gmra.mrb[0].mxu0 %v469
      %v632 = vpop.f32.mrb[0].mxu0
      %v633 = vadd.f32 0.0, %v632
      %v634 = vpop.f32.mrb[0].mxu0
      %v635 = vadd.f32 0.0, %v634
      %636 = vdwg.mxu0
      %637 = vset.pattern.permute.xlu0 1
      %638 = vperm.xlu0 %637, %v454
      %v639 = vpop.permute.xlu0 %638
      %vm640 = vcmp.eq.s32.totalorder %v639, 1
      %v641 = vsel %vm640, %v603, %v459
      %v642 = vsel %vm640, %v605, %v460
      %v643 = vsel %vm640, %v609, %v461
      %v644 = vsel %vm640, %v611, %v462
      %v645 = vsel %vm640, %v615, %v463
      %v646 = vsel %vm640, %v617, %v464
      %v647 = vsel %vm640, %v621, %v465
      %v648 = vsel %vm640, %v623, %v466
      %v649 = vsel %vm640, %v627, %v467
      %v650 = vsel %vm640, %v629, %v468
      %v651 = vsel %vm640, %v633, %v469
      %v652 = vsel %vm640, %v635, %v470
      %654 = vset.pattern.permute.xlu0 3
      %655 = vperm.xlu0 %654, %v275
      %v656 = vpop.permute.xlu0 %655
      %v658 = vmul.f32 %v641, %v656
      %v659 = vmul.f32 %v642, %v656
      %v660 = vmul.f32 %v643, %v656
      %v661 = vmul.f32 %v644, %v656
      %v662 = vmax.f32 %v658, 0.0
      %v663 = vmax.f32 %v659, 0.0
      %v664 = vmax.f32 %v660, 0.0
      %v665 = vmax.f32 %v661, 0.0
      %v666 = vmin.f32 %v662, 1.0
      %v667 = vmin.f32 %v663, 1.0
      %v668 = vmin.f32 %v664, 1.0
      %v669 = vmin.f32 %v665, 1.0
      %v670 = vmul.f32 %v645, %v656
      %v671 = vmul.f32 %v646, %v656
      %v672 = vmul.f32 %v647, %v656
      %v673 = vmul.f32 %v648, %v656
      %v674 = vmax.f32 %v670, 0.0
      %v675 = vmax.f32 %v671, 0.0
      %v676 = vmax.f32 %v672, 0.0
      %v677 = vmax.f32 %v673, 0.0
      %v678 = vmin.f32 %v674, 1.0
      %v679 = vmin.f32 %v675, 1.0
      %v680 = vmin.f32 %v676, 1.0
      %v681 = vmin.f32 %v677, 1.0
      %v682 = vmul.f32 %v649, %v656
      %v683 = vmul.f32 %v650, %v656
      %v684 = vmul.f32 %v651, %v656
      %v685 = vmul.f32 %v652, %v656
      %v686 = vmax.f32 %v682, 0.0
      %v687 = vmax.f32 %v683, 0.0
      %v688 = vmax.f32 %v684, 0.0
      %v689 = vmax.f32 %v685, 0.0
      %v690 = vmin.f32 %v686, 1.0
      %v691 = vmin.f32 %v687, 1.0
      %v692 = vmin.f32 %v688, 1.0
      %v693 = vmin.f32 %v689, 1.0
      %v694 = vmul.f32 %v666, 0.299
      %v695 = vmul.f32 %v667, 0.299
      %v696 = vmul.f32 %v668, 0.299
      %v697 = vmul.f32 %v669, 0.299
      %v698 = vmul.f32 %v678, 0.587
      %v699 = vmul.f32 %v679, 0.587
      %v700 = vmul.f32 %v680, 0.587
      %v701 = vmul.f32 %v681, 0.587
      %v702 = vadd.f32 %v694, %v698
      %v703 = vadd.f32 %v695, %v699
      %v704 = vadd.f32 %v696, %v700
      %v705 = vadd.f32 %v697, %v701
      %v706 = vmul.f32 %v690, 0.114
      %v707 = vmul.f32 %v691, 0.114
      %v708 = vmul.f32 %v692, 0.114
      %v709 = vmul.f32 %v693, 0.114
      %v710 = vadd.f32 %v702, %v706
      %v711 = vadd.f32 %v703, %v707
      %v712 = vadd.f32 %v704, %v708
      %v713 = vadd.f32 %v705, %v709
      %v714 = vadd.f32 %v710, %v711
      %715 = vadd.xlane.f32.xlu0 %v714
      %v716 = vpop.xlane.xlu0 %715
      %v717 = vadd.f32 %v712, %v713
      %718 = vadd.xlane.f32.xlu0 %v717
      %v719 = vpop.xlane.xlu0 %718
      %v720 = vrcp.pop 256.0
      %v721 = vmul.f32 %v716, %v720
      %v722 = vmul.f32 %v719, %v720
      %723 = vset.pattern.permute.xlu0 4
      %724 = vperm.xlu0 %723, %v275
      %v725 = vpop.permute.xlu0 %724
      %v727 = vmul.f32 %v725, %v666
      %v728 = vmul.f32 %v725, %v667
      %v729 = vmul.f32 %v725, %v668
      %v730 = vmul.f32 %v725, %v669
      %v731 = vsub.f32 1.0, %v275
      %v732 = vmul.f32 %v731, %v721
      %v733 = vmul.f32 %v731, %v722
      %735 = vset.pattern.permute.xlu0 4
      %736 = vperm.xlu0 %735, %v732
      %v737 = vpop.permute.xlu0 %736
      %740 = vset.pattern.permute.xlu0 4
      %741 = vperm.xlu0 %740, %v733
      %v742 = vpop.permute.xlu0 %741
      %v744 = vadd.f32 %v727, %v737
      %v745 = vadd.f32 %v728, %v737
      %v746 = vadd.f32 %v729, %v742
      %v747 = vadd.f32 %v730, %v742
      %v748 = vmax.f32 %v744, 0.0
      %v749 = vmax.f32 %v745, 0.0
      %v750 = vmax.f32 %v746, 0.0
      %v751 = vmax.f32 %v747, 0.0
      %v752 = vmin.f32 %v748, 1.0
      %v753 = vmin.f32 %v749, 1.0
      %v754 = vmin.f32 %v750, 1.0
      %v755 = vmin.f32 %v751, 1.0
      %v756 = vmul.f32 %v725, %v678
      %v757 = vmul.f32 %v725, %v679
      %v758 = vmul.f32 %v725, %v680
      %v759 = vmul.f32 %v725, %v681
      %v760 = vadd.f32 %v756, %v737
      %v761 = vadd.f32 %v757, %v737
      %v762 = vadd.f32 %v758, %v742
      %v763 = vadd.f32 %v759, %v742
      %v764 = vmax.f32 %v760, 0.0
      %v765 = vmax.f32 %v761, 0.0
      %v766 = vmax.f32 %v762, 0.0
      %v767 = vmax.f32 %v763, 0.0
      %v768 = vmin.f32 %v764, 1.0
      %v769 = vmin.f32 %v765, 1.0
      %v770 = vmin.f32 %v766, 1.0
      %v771 = vmin.f32 %v767, 1.0
      %v772 = vmul.f32 %v725, %v690
      %v773 = vmul.f32 %v725, %v691
      %v774 = vmul.f32 %v725, %v692
      %v775 = vmul.f32 %v725, %v693
      %v776 = vadd.f32 %v772, %v737
      %v777 = vadd.f32 %v773, %v737
      %v778 = vadd.f32 %v774, %v742
      %v779 = vadd.f32 %v775, %v742
      %v780 = vmax.f32 %v776, 0.0
      %v781 = vmax.f32 %v777, 0.0
      %v782 = vmax.f32 %v778, 0.0
      %v783 = vmax.f32 %v779, 0.0
      %v784 = vmin.f32 %v780, 1.0
      %v785 = vmin.f32 %v781, 1.0
      %v786 = vmin.f32 %v782, 1.0
      %v787 = vmin.f32 %v783, 1.0
      %v788 = vmul.f32 %v752, 0.299
      %v789 = vmul.f32 %v753, 0.299
      %v790 = vmul.f32 %v754, 0.299
      %v791 = vmul.f32 %v755, 0.299
      %v792 = vmul.f32 %v768, 0.587
      %v793 = vmul.f32 %v769, 0.587
      %v794 = vmul.f32 %v770, 0.587
      %v795 = vmul.f32 %v771, 0.587
      %v796 = vadd.f32 %v788, %v792
      %v797 = vadd.f32 %v789, %v793
      %v798 = vadd.f32 %v790, %v794
      %v799 = vadd.f32 %v791, %v795
      %v800 = vmul.f32 %v784, 0.114
      %v801 = vmul.f32 %v785, 0.114
      %v802 = vmul.f32 %v786, 0.114
      %v803 = vmul.f32 %v787, 0.114
      %v804 = vadd.f32 %v796, %v800
      %v805 = vadd.f32 %v797, %v801
      %v806 = vadd.f32 %v798, %v802
      %v807 = vadd.f32 %v799, %v803
      %808 = vset.pattern.permute.xlu0 5
      %809 = vperm.xlu0 %808, %v275
      %v810 = vpop.permute.xlu0 %809
      %v812 = vmul.f32 %v810, %v752
      %v813 = vmul.f32 %v810, %v753
      %v814 = vmul.f32 %v810, %v754
      %v815 = vmul.f32 %v810, %v755
      %817 = vset.pattern.permute.xlu0 5
      %818 = vperm.xlu0 %817, %v731
      %v819 = vpop.permute.xlu0 %818
      %v821 = vmul.f32 %v819, %v804
      %v822 = vmul.f32 %v819, %v805
      %v823 = vmul.f32 %v819, %v806
      %v824 = vmul.f32 %v819, %v807
      %v825 = vadd.f32 %v812, %v821
      %v826 = vadd.f32 %v813, %v822
      %v827 = vadd.f32 %v814, %v823
      %v828 = vadd.f32 %v815, %v824
      %v829 = vmax.f32 %v825, 0.0
      %v830 = vmax.f32 %v826, 0.0
      %v831 = vmax.f32 %v827, 0.0
      %v832 = vmax.f32 %v828, 0.0
      %v833 = vmin.f32 %v829, 1.0
      %v834 = vmin.f32 %v830, 1.0
      %v835 = vmin.f32 %v831, 1.0
      %v836 = vmin.f32 %v832, 1.0
      %v837 = vmul.f32 %v810, %v768
      %v838 = vmul.f32 %v810, %v769
      %v839 = vmul.f32 %v810, %v770
      %v840 = vmul.f32 %v810, %v771
      %v841 = vadd.f32 %v837, %v821
      %v842 = vadd.f32 %v838, %v822
      %v843 = vadd.f32 %v839, %v823
      %v844 = vadd.f32 %v840, %v824
      %v845 = vmax.f32 %v841, 0.0
      %v846 = vmax.f32 %v842, 0.0
      %v847 = vmax.f32 %v843, 0.0
      %v848 = vmax.f32 %v844, 0.0
      %v849 = vmin.f32 %v845, 1.0
      %v850 = vmin.f32 %v846, 1.0
      %v851 = vmin.f32 %v847, 1.0
      %v852 = vmin.f32 %v848, 1.0
      %v853 = vmul.f32 %v810, %v784
      %v854 = vmul.f32 %v810, %v785
      %v855 = vmul.f32 %v810, %v786
      %v856 = vmul.f32 %v810, %v787
      %v857 = vadd.f32 %v853, %v821
      %v858 = vadd.f32 %v854, %v822
      %v859 = vadd.f32 %v855, %v823
      %v860 = vadd.f32 %v856, %v824
      %v861 = vmax.f32 %v857, 0.0
      %v862 = vmax.f32 %v858, 0.0
      %v863 = vmax.f32 %v859, 0.0
      %v864 = vmax.f32 %v860, 0.0
      %v865 = vmin.f32 %v861, 1.0
      %v866 = vmin.f32 %v862, 1.0
      %v867 = vmin.f32 %v863, 1.0
      %v868 = vmin.f32 %v864, 1.0
      %v869 = vmax.f32 %v833, %v849
      %v870 = vmax.f32 %v834, %v850
      %v871 = vmax.f32 %v835, %v851
      %v872 = vmax.f32 %v836, %v852
      %v873 = vmax.f32 %v869, %v865
      %v874 = vmax.f32 %v870, %v866
      %v875 = vmax.f32 %v871, %v867
      %v876 = vmax.f32 %v872, %v868
      %v877 = vmin.f32 %v833, %v849
      %v878 = vmin.f32 %v834, %v850
      %v879 = vmin.f32 %v835, %v851
      %v880 = vmin.f32 %v836, %v852
      %v881 = vmin.f32 %v877, %v865
      %v882 = vmin.f32 %v878, %v866
      %v883 = vmin.f32 %v879, %v867
      %v884 = vmin.f32 %v880, %v868
      %v885 = vsub.f32 %v873, %v881
      %v886 = vsub.f32 %v874, %v882
      %v887 = vsub.f32 %v875, %v883
      %v888 = vsub.f32 %v876, %v884
      %v889 = vadd.f32 %v873, 1e-08
      %v890 = vadd.f32 %v874, 1e-08
      %v891 = vadd.f32 %v875, 1e-08
      %v892 = vadd.f32 %v876, 1e-08
      %v893 = vrcp.pop %v889
      %v894 = vrcp.pop %v890
      %v895 = vrcp.pop %v891
      %v896 = vrcp.pop %v892
      %v897 = vadd.f32 %v885, 1e-08
      %v898 = vadd.f32 %v886, 1e-08
      %v899 = vadd.f32 %v887, 1e-08
      %v900 = vadd.f32 %v888, 1e-08
      %v901 = vrcp.pop %v897
      %v902 = vrcp.pop %v898
      %v903 = vrcp.pop %v899
      %v904 = vrcp.pop %v900
      %v905 = vmul.f32 %v885, %v893
      %v906 = vmul.f32 %v886, %v894
      %v907 = vmul.f32 %v887, %v895
      %v908 = vmul.f32 %v888, %v896
      %v909 = vsub.f32 %v873, %v833
      %v910 = vsub.f32 %v874, %v834
      %v911 = vsub.f32 %v875, %v835
      %v912 = vsub.f32 %v876, %v836
      %v913 = vmul.f32 %v909, %v901
      %v914 = vmul.f32 %v910, %v902
      %v915 = vmul.f32 %v911, %v903
      %v916 = vmul.f32 %v912, %v904
      %v917 = vsub.f32 %v873, %v849
      %v918 = vsub.f32 %v874, %v850
      %v919 = vsub.f32 %v875, %v851
      %v920 = vsub.f32 %v876, %v852
      %v921 = vmul.f32 %v917, %v901
      %v922 = vmul.f32 %v918, %v902
      %v923 = vmul.f32 %v919, %v903
      %v924 = vmul.f32 %v920, %v904
      %v925 = vsub.f32 %v873, %v865
      %v926 = vsub.f32 %v874, %v866
      %v927 = vsub.f32 %v875, %v867
      %v928 = vsub.f32 %v876, %v868
      %v929 = vmul.f32 %v925, %v901
      %v930 = vmul.f32 %v926, %v902
      %v931 = vmul.f32 %v927, %v903
      %v932 = vmul.f32 %v928, %v904
      %vm933 = vcmp.eq.f32.partialorder %v873, %v833
      %vm934 = vcmp.eq.f32.partialorder %v874, %v834
      %vm935 = vcmp.eq.f32.partialorder %v875, %v835
      %vm936 = vcmp.eq.f32.partialorder %v876, %v836
      %v937 = vsub.f32 %v929, %v921
      %v938 = vsub.f32 %v930, %v922
      %v939 = vsub.f32 %v931, %v923
      %v940 = vsub.f32 %v932, %v924
      %vm941 = vcmp.eq.f32.partialorder %v873, %v849
      %vm942 = vcmp.eq.f32.partialorder %v874, %v850
      %vm943 = vcmp.eq.f32.partialorder %v875, %v851
      %vm944 = vcmp.eq.f32.partialorder %v876, %v852
      %v945 = vadd.f32 %v913, 2.0
      %v946 = vadd.f32 %v914, 2.0
      %v947 = vadd.f32 %v915, 2.0
      %v948 = vadd.f32 %v916, 2.0
      %v949 = vsub.f32 %v945, %v929
      %v950 = vsub.f32 %v946, %v930
      %v951 = vsub.f32 %v947, %v931
      %v952 = vsub.f32 %v948, %v932
      %v953 = vadd.f32 %v921, 4.0
      %v954 = vadd.f32 %v922, 4.0
      %v955 = vadd.f32 %v923, 4.0
      %v956 = vadd.f32 %v924, 4.0
      %v957 = vsub.f32 %v953, %v913
      %v958 = vsub.f32 %v954, %v914
      %v959 = vsub.f32 %v955, %v915
      %v960 = vsub.f32 %v956, %v916
      %v961 = vsel %vm941, %v949, %v957
      %v962 = vsel %vm942, %v950, %v958
      %v963 = vsel %vm943, %v951, %v959
      %v964 = vsel %vm944, %v952, %v960
      %v965 = vsel %vm933, %v937, %v961
      %v966 = vsel %vm934, %v938, %v962
      %v967 = vsel %vm935, %v939, %v963
      %v968 = vsel %vm936, %v940, %v964
      %v969 = vmul.f32 %v965, 0.16666667
      %v970 = vmul.f32 %v966, 0.16666667
      %v971 = vmul.f32 %v967, 0.16666667
      %v972 = vmul.f32 %v968, 0.16666667
      %v973 = vfloor.f32 %v969
      %v974 = vfloor.f32 %v970
      %v975 = vfloor.f32 %v971
      %v976 = vfloor.f32 %v972
      %v977 = vsub.f32 %v969, %v973
      %v978 = vsub.f32 %v970, %v974
      %v979 = vsub.f32 %v971, %v975
      %v980 = vsub.f32 %v972, %v976
      %981 = vset.pattern.permute.xlu0 6
      %982 = vperm.xlu0 %981, %v275
      %v983 = vpop.permute.xlu0 %982
      %v985 = vadd.f32 %v977, %v983
      %v986 = vadd.f32 %v978, %v983
      %v987 = vadd.f32 %v979, %v983
      %v988 = vadd.f32 %v980, %v983
      %v989 = vfloor.f32 %v985
      %v990 = vfloor.f32 %v986
      %v991 = vfloor.f32 %v987
      %v992 = vfloor.f32 %v988
      %v993 = vsub.f32 %v985, %v989
      %v994 = vsub.f32 %v986, %v990
      %v995 = vsub.f32 %v987, %v991
      %v996 = vsub.f32 %v988, %v992
      %v997 = vmul.f32 %v993, 6.0
      %v998 = vmul.f32 %v994, 6.0
      %v999 = vmul.f32 %v995, 6.0
      %v1000 = vmul.f32 %v996, 6.0
      %v1001 = vfloor.f32 %v997
      %v1002 = vfloor.f32 %v998
      %v1003 = vfloor.f32 %v999
      %v1004 = vfloor.f32 %v1000
      %v1005 = vsub.f32 %v997, %v1001
      %v1006 = vsub.f32 %v998, %v1002
      %v1007 = vsub.f32 %v999, %v1003
      %v1008 = vsub.f32 %v1000, %v1004
      %v1009 = vsub.f32 1.0, %v905
      %v1010 = vsub.f32 1.0, %v906
      %v1011 = vsub.f32 1.0, %v907
      %v1012 = vsub.f32 1.0, %v908
      %v1013 = vmul.f32 %v873, %v1009
      %v1014 = vmul.f32 %v874, %v1010
      %v1015 = vmul.f32 %v875, %v1011
      %v1016 = vmul.f32 %v876, %v1012
      %v1017 = vmul.f32 %v1005, %v905
      %v1018 = vmul.f32 %v1006, %v906
      %v1019 = vmul.f32 %v1007, %v907
      %v1020 = vmul.f32 %v1008, %v908
      %v1021 = vsub.f32 1.0, %v1017
      %v1022 = vsub.f32 1.0, %v1018
      %v1023 = vsub.f32 1.0, %v1019
      %v1024 = vsub.f32 1.0, %v1020
      %v1025 = vmul.f32 %v873, %v1021
      %v1026 = vmul.f32 %v874, %v1022
      %v1027 = vmul.f32 %v875, %v1023
      %v1028 = vmul.f32 %v876, %v1024
      %v1029 = vsub.f32 1.0, %v1005
      %v1030 = vsub.f32 1.0, %v1006
      %v1031 = vsub.f32 1.0, %v1007
      %v1032 = vsub.f32 1.0, %v1008
      %v1033 = vmul.f32 %v1029, %v905
      %v1034 = vmul.f32 %v1030, %v906
      %v1035 = vmul.f32 %v1031, %v907
      %v1036 = vmul.f32 %v1032, %v908
      %v1037 = vsub.f32 1.0, %v1033
      %v1038 = vsub.f32 1.0, %v1034
      %v1039 = vsub.f32 1.0, %v1035
      %v1040 = vsub.f32 1.0, %v1036
      %v1041 = vmul.f32 %v873, %v1037
      %v1042 = vmul.f32 %v874, %v1038
      %v1043 = vmul.f32 %v875, %v1039
      %v1044 = vmul.f32 %v876, %v1040
      %v1045 = vmul.f32 %v1001, 0.16666667
      %v1046 = vmul.f32 %v1002, 0.16666667
      %v1047 = vmul.f32 %v1003, 0.16666667
      %v1048 = vmul.f32 %v1004, 0.16666667
      %v1049 = vfloor.f32 %v1045
      %v1050 = vfloor.f32 %v1046
      %v1051 = vfloor.f32 %v1047
      %v1052 = vfloor.f32 %v1048
      %v1053 = vmul.f32 %v1049, 6.0
      %v1054 = vmul.f32 %v1050, 6.0
      %v1055 = vmul.f32 %v1051, 6.0
      %v1056 = vmul.f32 %v1052, 6.0
      %v1057 = vsub.f32 %v1001, %v1053
      %v1058 = vsub.f32 %v1002, %v1054
      %v1059 = vsub.f32 %v1003, %v1055
      %v1060 = vsub.f32 %v1004, %v1056
      %vm1061 = vcmp.eq.f32.partialorder %v1057, 0.0
      %vm1062 = vcmp.eq.f32.partialorder %v1058, 0.0
      %vm1063 = vcmp.eq.f32.partialorder %v1059, 0.0
      %vm1064 = vcmp.eq.f32.partialorder %v1060, 0.0
      %vm1065 = vcmp.eq.f32.partialorder %v1057, 1.0
      %vm1066 = vcmp.eq.f32.partialorder %v1058, 1.0
      %vm1067 = vcmp.eq.f32.partialorder %v1059, 1.0
      %vm1068 = vcmp.eq.f32.partialorder %v1060, 1.0
      %vm1069 = vcmp.eq.f32.partialorder %v1057, 2.0
      %vm1070 = vcmp.eq.f32.partialorder %v1058, 2.0
      %vm1071 = vcmp.eq.f32.partialorder %v1059, 2.0
      %vm1072 = vcmp.eq.f32.partialorder %v1060, 2.0
      %vm1073 = vcmp.eq.f32.partialorder %v1057, 3.0
      %vm1074 = vcmp.eq.f32.partialorder %v1058, 3.0
      %vm1075 = vcmp.eq.f32.partialorder %v1059, 3.0
      %vm1076 = vcmp.eq.f32.partialorder %v1060, 3.0
      %vm1077 = vcmp.eq.f32.partialorder %v1057, 4.0
      %vm1078 = vcmp.eq.f32.partialorder %v1058, 4.0
      %vm1079 = vcmp.eq.f32.partialorder %v1059, 4.0
      %vm1080 = vcmp.eq.f32.partialorder %v1060, 4.0
      %v1081 = vsel %vm1077, %v1041, %v873
      %v1082 = vsel %vm1078, %v1042, %v874
      %v1083 = vsel %vm1079, %v1043, %v875
      %v1084 = vsel %vm1080, %v1044, %v876
      %v1085 = vsel %vm1073, %v1013, %v1081
      %v1086 = vsel %vm1074, %v1014, %v1082
      %v1087 = vsel %vm1075, %v1015, %v1083
      %v1088 = vsel %vm1076, %v1016, %v1084
      %v1089 = vsel %vm1069, %v1013, %v1085
      %v1090 = vsel %vm1070, %v1014, %v1086
      %v1091 = vsel %vm1071, %v1015, %v1087
      %v1092 = vsel %vm1072, %v1016, %v1088
      %v1093 = vsel %vm1065, %v1025, %v1089
      %v1094 = vsel %vm1066, %v1026, %v1090
      %v1095 = vsel %vm1067, %v1027, %v1091
      %v1096 = vsel %vm1068, %v1028, %v1092
      %v1097 = vsel %vm1061, %v873, %v1093
      %v1098 = vsel %vm1062, %v874, %v1094
      %v1099 = vsel %vm1063, %v875, %v1095
      %v1100 = vsel %vm1064, %v876, %v1096
      %v1101 = vsel %vm1073, %v1025, %v1013
      %v1102 = vsel %vm1074, %v1026, %v1014
      %v1103 = vsel %vm1075, %v1027, %v1015
      %v1104 = vsel %vm1076, %v1028, %v1016
      %v1105 = vsel %vm1069, %v873, %v1101
      %v1106 = vsel %vm1070, %v874, %v1102
      %v1107 = vsel %vm1071, %v875, %v1103
      %v1108 = vsel %vm1072, %v876, %v1104
      %v1109 = vsel %vm1065, %v873, %v1105
      %v1110 = vsel %vm1066, %v874, %v1106
      %v1111 = vsel %vm1067, %v875, %v1107
      %v1112 = vsel %vm1068, %v876, %v1108
      %v1113 = vsel %vm1061, %v1041, %v1109
      %v1114 = vsel %vm1062, %v1042, %v1110
      %v1115 = vsel %vm1063, %v1043, %v1111
      %v1116 = vsel %vm1064, %v1044, %v1112
      %v1117 = vsel %vm1077, %v873, %v1025
      %v1118 = vsel %vm1078, %v874, %v1026
      %v1119 = vsel %vm1079, %v875, %v1027
      %v1120 = vsel %vm1080, %v876, %v1028
      %v1121 = vsel %vm1073, %v873, %v1117
      %v1122 = vsel %vm1074, %v874, %v1118
      %v1123 = vsel %vm1075, %v875, %v1119
      %v1124 = vsel %vm1076, %v876, %v1120
      %v1125 = vsel %vm1069, %v1041, %v1121
      %v1126 = vsel %vm1070, %v1042, %v1122
      %v1127 = vsel %vm1071, %v1043, %v1123
      %v1128 = vsel %vm1072, %v1044, %v1124
      %v1129 = vsel %vm1065, %v1013, %v1125
      %v1130 = vsel %vm1066, %v1014, %v1126
      %v1131 = vsel %vm1067, %v1015, %v1127
      %v1132 = vsel %vm1068, %v1016, %v1128
      %v1133 = vsel %vm1061, %v1013, %v1129
      %v1134 = vsel %vm1062, %v1014, %v1130
      %v1135 = vsel %vm1063, %v1015, %v1131
      %v1136 = vsel %vm1064, %v1016, %v1132
      %v1137 = vmax.f32 %v1097, 0.0
      %v1138 = vmax.f32 %v1098, 0.0
      %v1139 = vmax.f32 %v1099, 0.0
      %v1140 = vmax.f32 %v1100, 0.0
      %v1141 = vmin.f32 %v1137, 1.0
      %v1142 = vmin.f32 %v1138, 1.0
      %v1143 = vmin.f32 %v1139, 1.0
      %v1144 = vmin.f32 %v1140, 1.0
      %v1145 = vmax.f32 %v1113, 0.0
      %v1146 = vmax.f32 %v1114, 0.0
      %v1147 = vmax.f32 %v1115, 0.0
      %v1148 = vmax.f32 %v1116, 0.0
      %v1149 = vmin.f32 %v1145, 1.0
      %v1150 = vmin.f32 %v1146, 1.0
      %v1151 = vmin.f32 %v1147, 1.0
      %v1152 = vmin.f32 %v1148, 1.0
      %v1153 = vmax.f32 %v1133, 0.0
      %v1154 = vmax.f32 %v1134, 0.0
      %v1155 = vmax.f32 %v1135, 0.0
      %v1156 = vmax.f32 %v1136, 0.0
      %v1157 = vmin.f32 %v1153, 1.0
      %v1158 = vmin.f32 %v1154, 1.0
      %v1159 = vmin.f32 %v1155, 1.0
      %v1160 = vmin.f32 %v1156, 1.0
      %1161 = vset.pattern.permute.xlu0 2
      %1162 = vperm.xlu0 %1161, %v454
      %v1163 = vpop.permute.xlu0 %1162
      %vm1164 = vcmp.eq.s32.totalorder %v1163, 1
      %v1165 = vsel %vm1164, %v1141, %v641
      %v1166 = vsel %vm1164, %v1142, %v642
      %v1167 = vsel %vm1164, %v1143, %v643
      %v1168 = vsel %vm1164, %v1144, %v644
      %v1169 = vsel %vm1164, %v1149, %v645
      %v1170 = vsel %vm1164, %v1150, %v646
      %v1171 = vsel %vm1164, %v1151, %v647
      %v1172 = vsel %vm1164, %v1152, %v648
      %v1173 = vsel %vm1164, %v1157, %v649
      %v1174 = vsel %vm1164, %v1158, %v650
      %v1175 = vsel %vm1164, %v1159, %v651
      %v1176 = vsel %vm1164, %v1160, %v652
      %1177 = vst [vmem:[%s269] sm:$0xff] %v1165
      %1178 = vst [vmem:[%s269 + $0x8] sm:$0xff] %v1166
      %1179 = vst [vmem:[%s269 + $0x10] sm:$0xff] %v1169
      %1180 = vst [vmem:[%s269 + $0x18] sm:$0xff] %v1170
      %1181 = vst [vmem:[%s269 + $0x20] sm:$0xff] %v1173
      %1182 = vst [vmem:[%s269 + $0x28] sm:$0xff] %v1174
      %1183 = vst [vmem:[%s274] sm:$0xff] %v1167
      %1184 = vst [vmem:[%s274 + $0x8] sm:$0xff] %v1168
      %1185 = vst [vmem:[%s274 + $0x10] sm:$0xff] %v1171
      %1186 = vst [vmem:[%s274 + $0x18] sm:$0xff] %v1172
      %1187 = vst [vmem:[%s274 + $0x20] sm:$0xff] %v1175
      %1188 = vst [vmem:[%s274 + $0x28] sm:$0xff] %v1176
      %p1189 = scmp.lt.s32.totalorder %s17, 1
      %s1190 = scalar_select %p1189, %s17, 1
      %s1191 = smul.addr %s1190, 6
      %s1192 = smul.addr %s1191, 8
      %s1193 = scalar_lea.vmem %s4, %s1192
      %p1194 = scmp.lt.s32.totalorder %s17, 1
      %s1195 = scalar_select %p1194, %s17, 1
      %s1196 = smul.addr %s1195, 6
      %s1197 = smul.addr %s1196, 8
      %s1198 = scalar_lea.vmem %s5, %s1197
      // Predicated region
      $region37: #{data_augmentation.1} parent=35 // pred_check
        %p1199 = pneg %p134
      $region38: #{data_augmentation.1} parent=35 // pred_check_branch
        %1201 = sbr.rel (%p1199) target = $region40
      $region39: #{data_augmentation.1} parent=35 // pred_region
        _
      $region40: #{data_augmentation.1} parent=35 // pred_fallthru
        _
      // Predicated region
      $region41: #{data_augmentation.1} parent=35 // pred_check
        %p1202 = pneg %p160
      $region42: #{data_augmentation.1} parent=35 // pred_check_branch
        %1204 = sbr.rel (%p1202) target = $region44
      $region43: #{data_augmentation.1} parent=35 // pred_region
        _
      $region44: #{data_augmentation.1} parent=35 // pred_fallthru
        _
    $region36: #{data_augmentation.1} parent=5 // pred_fallthru
      _
    %p1205 = scmp.le.s32.totalorder 2, %s12
    // Predicated region
    $region45: #{data_augmentation.1} parent=5 // pred_check
      %p1206 = pneg %p1205
    $region46: #{data_augmentation.1} parent=5 // pred_check_branch
      %1208 = sbr.rel (%p1206) target = $region48
    $region47: #{data_augmentation.1} parent=5 // pred_region
      %s1209 = ssub.s32 %s12, 2
      // Predicated region
      $region49: #{data_augmentation.1} parent=47 // pred_check
        %p1210 = pneg %p140
      $region50: #{data_augmentation.1} parent=47 // pred_check_branch
        %1212 = sbr.rel (%p1210) target = $region52
      $region51: #{data_augmentation.1} parent=47 // pred_region
        %p1213 = scmp.lt.s32.totalorder %s18, 1
        %s1214 = scalar_select %p1213, %s18, 1
        %s1215 = smul.addr %s1214, 6
        %s1216 = smul.addr %s1215, 8
        %s1217 = scalar_lea.vmem %s4, %s1216
      $region52: #{data_augmentation.1} parent=47 // pred_fallthru
        _
      // Predicated region
      $region53: #{data_augmentation.1} parent=47 // pred_check
        %p1218 = pneg %p166
      $region54: #{data_augmentation.1} parent=47 // pred_check_branch
        %1220 = sbr.rel (%p1218) target = $region56
      $region55: #{data_augmentation.1} parent=47 // pred_region
        %p1221 = scmp.lt.s32.totalorder %s18, 1
        %s1222 = scalar_select %p1221, %s18, 1
        %s1223 = smul.addr %s1222, 6
        %s1224 = smul.addr %s1223, 8
        %s1225 = scalar_lea.vmem %s5, %s1224
      $region56: #{data_augmentation.1} parent=47 // pred_fallthru
        _
    $region48: #{data_augmentation.1} parent=5 // pred_fallthru
      _
  $region6: #{data_augmentation.1} parent=0 // loop_footer
    %s16 = sadd.s32 1, %s12
  $region7: #{data_augmentation.1} parent=0 // loop_footer_branch
    %11 = sbr.rel target = $region3
  $region8: #{data_augmentation.1} parent=0 // loop_exit
    _

</llo_original>
